<compile_context>
chip_gen: v7x
topology: tpu7x:2x2x1
jax: 0.10.0
libtpu: 0.0.40
codegen_flags: <defaults>
</compile_context>

<pallas_src>
import functools

import jax
import jax.numpy as jnp
import numpy as np
from jax.experimental import pallas as pl
from jax.experimental.pallas import tpu as pltpu


# ----------------------------------------------------------------------------
# Pallas kernel: one (batch, q-tile) per grid step, all heads fused (batched).
#   scores = q @ k^T + c2p_bias + p2c_bias      (q already scaled, biased)
#   probs  = masked softmax(scores)             (XSoftmax semantics)
#   out    = probs @ v                          written lane-dense [tq, H]
# ----------------------------------------------------------------------------
def _disentangled_attn_kernel(q_ref, k_ref, v_ref, pk_ref, pq_ref, m_ref,
                              sel_ref, o_ref, *, num_heads, head_dim):
    f32 = jnp.float32

    q = q_ref[...]                      # [h, tq, d]  bf16 (pre-scaled, +q_bias)
    k = k_ref[...]                      # [h, N,  d]  bf16
    v = v_ref[...]                      # [h, N,  d]  bf16 (already +v_bias)
    pk = pk_ref[...]                    # [h, 2s, d]  bf16  pos_proj(rel_emb)
    pq = pq_ref[...]                    # [h, 2s, d]  bf16  pos_q_proj(rel_emb)/scale
    valid = m_ref[...] > 0              # [tq, N] bool
    sel = sel_ref[...].astype(f32)      # [tq, N, 2s] one-hot of clamp(i-j+span)

    # head-batched MXU matmuls: bf16 operands, f32 accumulation
    scores = jnp.einsum('hqd,hkd->hqk', q, k,
                        preferred_element_type=f32)                 # [h, tq, N]
    c2p_pre = jnp.einsum('hqd,hrd->hqr', q, pk,
                         preferred_element_type=f32)                # [h, tq, 2s]
    p2c_pre = jnp.einsum('hkd,hrd->hkr', k, pq,
                         preferred_element_type=f32)                # [h, N, 2s]

    # Disentangled relative-position bias:
    #   c2p[h,i,j] = c2p_pre[h, i, clamp(i-j+span)]
    #   p2c[h,i,j] = p2c_pre[h, j, clamp(i-j+span)]
    # realized with the bf16 one-hot selection tensor.  Only the two small
    # [tq, N] mul-reduces per head are unrolled here (bounded live set);
    # all matmuls / softmax stay head-batched.
    # TODO(synk): replace with a strided pltpu.roll diagonal shift (XLU).
    rel = []
    for h in range(num_heads):
        c2p_h = jnp.sum(sel * c2p_pre[h][:, None, :], axis=-1)      # [tq, N]
        p2c_h = jnp.sum(sel * p2c_pre[h][None, :, :], axis=-1)      # [tq, N]
        rel.append(c2p_h + p2c_h)
    scores = scores + jnp.stack(rel, axis=0)                        # [h, tq, N]

    # XSoftmax: fill masked with dtype-min, softmax (f32), re-zero masked
    big_neg = jnp.finfo(f32).min
    scores = jnp.where(valid[None], scores, big_neg)
    mx = jnp.max(scores, axis=-1, keepdims=True)
    e = jnp.exp(scores - mx)
    s = jnp.sum(e, axis=-1, keepdims=True)
    probs = jnp.where(valid[None], e * pl.reciprocal(s, approx=True), 0.0)

    ctx = jnp.einsum('hqk,hkd->hqd', probs.astype(v.dtype), v,
                     preferred_element_type=f32)                    # [h, tq, d]

    # lane-dense [tq, H] output: heads concatenated along lanes, single store
    out = jnp.concatenate([ctx[h] for h in range(num_heads)], axis=-1)
    o_ref[...] = out.astype(o_ref.dtype)


def _attention_core(q, k, v, pos_k, pos_q, mask, sel, *, q_block):
    """q,k,v: [B, heads, N, d] bf16; pos_k/pos_q: [heads, 2s, d] bf16;
    mask: [B, N, N] int32; sel: [N, N, 2s] bf16.  Returns [B, N, heads*d] f32."""
    B, n_heads, N, d = q.shape
    H = n_heads * d
    two_span = sel.shape[-1]
    assert N % q_block == 0
    n_q = N // q_block

    kernel = functools.partial(_disentangled_attn_kernel,
                               num_heads=n_heads, head_dim=d)

    flops_per_bh = (2 * N * N * d                 # q @ k^T
                    + 2 * 2 * N * two_span * d    # c2p_pre, p2c_pre
                    + 2 * 2 * N * N * two_span    # one-hot gathers (VALU)
                    + 2 * N * N * d)              # probs @ v
    cost = pl.CostEstimate(
        flops=int(B * n_heads * flops_per_bh),
        transcendentals=int(B * n_heads * N * N),
        bytes_accessed=int((3 * B * n_heads * N * d
                            + 2 * n_heads * two_span * d) * 2
                           + B * N * N * 4
                           + N * N * two_span * 2
                           + B * N * H * 4),
    )

    return pl.pallas_call(
        kernel,
        out_shape=jax.ShapeDtypeStruct((B, N, H), jnp.float32),
        grid_spec=pltpu.PrefetchScalarGridSpec(
            num_scalar_prefetch=0,
            grid=(B, n_q),
            in_specs=[
                pl.BlockSpec((None, n_heads, q_block, d),
                             lambda b, t: (b, 0, t, 0)),                  # q
                pl.BlockSpec((None, n_heads, N, d),
                             lambda b, t: (b, 0, 0, 0)),                  # k
                pl.BlockSpec((None, n_heads, N, d),
                             lambda b, t: (b, 0, 0, 0)),                  # v
                pl.BlockSpec((n_heads, two_span, d),
                             lambda b, t: (0, 0, 0)),                     # pos_k
                pl.BlockSpec((n_heads, two_span, d),
                             lambda b, t: (0, 0, 0)),                     # pos_q
                pl.BlockSpec((None, q_block, N),
                             lambda b, t: (b, t, 0)),                     # mask
                pl.BlockSpec((q_block, N, two_span),
                             lambda b, t: (t, 0, 0)),                     # sel
            ],
            out_specs=pl.BlockSpec((None, q_block, H),
                                   lambda b, t: (b, t, 0)),
        ),
        compiler_params=pltpu.CompilerParams(
            dimension_semantics=("parallel", "parallel"),
            vmem_limit_bytes=64 * 1024 * 1024),
        cost_estimate=cost,
    )(q, k, v, pos_k, pos_q, mask, sel)


# ----------------------------------------------------------------------------
# JAX glue: projections / reshapes exactly matching the PyTorch module
# ----------------------------------------------------------------------------
def disentangled_self_attention(hidden_states, attention_mask, rel_embeddings,
                                params, *, num_heads, max_rel_pos):
    B, N, H = hidden_states.shape
    d = H // num_heads
    scale_factor = 3  # 1 + len(['c2p', 'p2c'])

    # in_proj (bias-free), transpose_for_scores, chunk into q/k/v
    qp = hidden_states @ params["in_proj_w"].T                        # [B, N, 3H]
    qp = qp.reshape(B, N, num_heads, 3 * d).transpose(0, 2, 1, 3)     # [B, h, N, 3d]
    q, k, v = jnp.split(qp, 3, axis=-1)                               # each [B, h, N, d]

    q = q + params["q_bias"].reshape(num_heads, d)[None, :, None, :]
    v = v + params["v_bias"].reshape(num_heads, d)[None, :, None, :]

    scale = jnp.sqrt(jnp.float32(d) * scale_factor)
    q = q / scale

    # relative position embeddings -> per-head positional key / query
    att_span = min(N, max_rel_pos)
    rel_emb = rel_embeddings[max_rel_pos - att_span: max_rel_pos + att_span]   # [2s, H]
    pos_k = rel_emb @ params["pos_proj_w"].T                                   # [2s, H]
    pos_q = rel_emb @ params["pos_q_proj_w"].T + params["pos_q_proj_b"]        # [2s, H]
    pos_k = pos_k.reshape(2 * att_span, num_heads, d).transpose(1, 0, 2)       # [h,2s,d]
    pos_q = (pos_q / scale).reshape(2 * att_span, num_heads, d).transpose(1, 0, 2)

    # Static relative-position one-hot selection, stored bf16 (halved footprint).
    #   sel[i, j, r] = (clamp(i - j + span, 0, 2*span-1) == r)
    two_span = 2 * att_span
    idx = np.clip(np.arange(N)[:, None] - np.arange(N)[None, :] + att_span,
                  0, two_span - 1)                                             # [N, N]
    sel = (idx[:, :, None] == np.arange(two_span)[None, None, :])              # [N,N,2s]
    sel = jnp.asarray(sel, dtype=jnp.bfloat16)

    to_bf16 = lambda x: x.astype(jnp.bfloat16)   # MXU-native operands
    q_block = 128 if N % 128 == 0 else N

    # Kernel writes lane-dense [B, N, H]; no wrapper-side transpose needed.
    return _attention_core(to_bf16(q), to_bf16(k), to_bf16(v),
                           to_bf16(pos_k), to_bf16(pos_q),
                           attention_mask.astype(jnp.int32), sel,
                           q_block=q_block)


# ----------------------------------------------------------------------------
# Pure-JAX reference (literal port of the PyTorch forward) for validation
# ----------------------------------------------------------------------------
def _reference(hidden_states, attention_mask, rel_embeddings, params,
               *, num_heads, max_rel_pos):
    B, N, H = hidden_states.shape
    d = H // num_heads
    scale_factor = 3

    def t4s(x):
        s = x.shape[:-1] + (num_heads, -1)
        return x.reshape(s).transpose(0, 2, 1, 3)

    qp = hidden_states @ params["in_proj_w"].T
    q, k, v = jnp.split(t4s(qp), 3, axis=-1)
    q = q + t4s(params["q_bias"][None, None, :])
    v = v + t4s(params["v_bias"][None, None, :])
    scale = jnp.sqrt(jnp.float32(d) * scale_factor)
    q = q / scale
    scores = q @ jnp.swapaxes(k, -1, -2)

    rel_pos = (jnp.arange(N)[:, None] - jnp.arange(N)[None, :])[None, None]
    span = min(N, max_rel_pos)
    re = rel_embeddings[max_rel_pos - span: max_rel_pos + span][None]
    pos_k = t4s(re @ params["pos_proj_w"].T)
    c2p_att = q @ jnp.swapaxes(pos_k, -1, -2)
    c2p_pos = jnp.clip(rel_pos + span, 0, 2 * span - 1)
    c2p = jnp.take_along_axis(
        c2p_att, jnp.broadcast_to(c2p_pos, (B, num_heads, N, N)), axis=-1)

    pos_q = t4s(re @ params["pos_q_proj_w"].T + params["pos_q_proj_b"])
    pos_q = pos_q / jnp.sqrt(jnp.float32(d) * scale_factor)
    p2c_pos = jnp.clip(-rel_pos + span, 0, 2 * span - 1)
    p2c_att = k @ jnp.swapaxes(pos_q, -1, -2)
    p2c = jnp.swapaxes(
        jnp.take_along_axis(
            p2c_att, jnp.broadcast_to(p2c_pos, (B, num_heads, N, N)), axis=-1),
        -1, -2)

    scores = scores + c2p + p2c

    rmask = attention_mask[:, None] == 0                       # [B, 1, N, N]
    scores = jnp.where(rmask, jnp.finfo(scores.dtype).min, scores)
    probs = jax.nn.softmax(scores, axis=-1)
    probs = jnp.where(rmask, 0.0, probs)
    ctx = probs @ v
    return ctx.transpose(0, 2, 1, 3).reshape(B, N, H)


if __name__ == "__main__":
    B, N, H, num_heads, max_rel = 2, 8, 32, 4, 8

    key = jax.random.PRNGKey(0)
    ks = jax.random.split(key, 8)
    params = {
        "in_proj_w":    jax.random.normal(ks[0], (3 * H, H), jnp.float32) * 0.05,
        "q_bias":       jax.random.normal(ks[1], (H,), jnp.float32) * 0.05,
        "v_bias":       jax.random.normal(ks[2], (H,), jnp.float32) * 0.05,
        "pos_proj_w":   jax.random.normal(ks[3], (H, H), jnp.float32) * 0.05,
        "pos_q_proj_w": jax.random.normal(ks[4], (H, H), jnp.float32) * 0.05,
        "pos_q_proj_b": jax.random.normal(ks[5], (H,), jnp.float32) * 0.05,
    }
    hidden = jax.random.normal(ks[6], (B, N, H), jnp.float32)
    rel_emb = jax.random.normal(ks[7], (2 * max_rel, H), jnp.float32) * 0.05

    # padding-style attention mask (extended mask m[:,None]*m[None,:])
    lens = jnp.array([8, 6])
    m1d = (jnp.arange(N)[None, :] < lens[:, None]).astype(jnp.int32)   # [B, N]
    attn_mask = m1d[:, :, None] * m1d[:, None, :]                       # [B, N, N]

    out = disentangled_self_attention(hidden, attn_mask, rel_emb, params,
                                      num_heads=num_heads, max_rel_pos=max_rel)
    out = jax.block_until_ready(out)

    ref = _reference(hidden, attn_mask, rel_emb, params,
                     num_heads=num_heads, max_rel_pos=max_rel)
    # bf16 MXU operands + approx reciprocal -> slightly looser than pure-f32
    np.testing.assert_allclose(np.asarray(out), np.asarray(ref),
                               rtol=2e-2, atol=5e-3)
    print("KERNEL_OK")
</pallas_src>

<mosaic_0001>
module attributes {stable_mosaic.version = 11 : i64} {
  func.func @_disentangled_attn_kernel(%arg0: i32, %arg1: i32, %arg2: memref<1x4x8x8xbf16, #tpu.memory_space<vmem>>, %arg3: memref<1x4x8x8xbf16, #tpu.memory_space<vmem>>, %arg4: memref<1x4x8x8xbf16, #tpu.memory_space<vmem>>, %arg5: memref<4x16x8xbf16, #tpu.memory_space<vmem>>, %arg6: memref<4x16x8xbf16, #tpu.memory_space<vmem>>, %arg7: memref<1x8x8xi32, #tpu.memory_space<vmem>>, %arg8: memref<8x8x16xbf16, #tpu.memory_space<vmem>>, %arg9: memref<1x8x32xf32, #tpu.memory_space<vmem>>) attributes {dimension_semantics = [#tpu.dimension_semantics<parallel>, #tpu.dimension_semantics<parallel>], iteration_bounds = array<i64: 2, 1>, scalar_prefetch = 0 : i64, scratch_operands = 0 : i64, tpu.core_type = #tpu.core_type<tc>, window_params = [{transform_indices = @transform_0, window_bounds = array<i64: 1, 4, 8, 8>}, {transform_indices = @transform_1, window_bounds = array<i64: 1, 4, 8, 8>}, {transform_indices = @transform_2, window_bounds = array<i64: 1, 4, 8, 8>}, {pipeline_mode = #tpu.pipeline_mode<synchronous>, transform_indices = @transform_3, window_bounds = array<i64: 4, 16, 8>}, {pipeline_mode = #tpu.pipeline_mode<synchronous>, transform_indices = @transform_4, window_bounds = array<i64: 4, 16, 8>}, {transform_indices = @transform_5, window_bounds = array<i64: 1, 8, 8>}, {transform_indices = @transform_6, window_bounds = array<i64: 8, 8, 16>}, {transform_indices = @transform_7, window_bounds = array<i64: 1, 8, 32>}]} {
    %c0 = arith.constant 0 : index
    %c0_0 = arith.constant 0 : index
    %c0_1 = arith.constant 0 : index
    %c0_2 = arith.constant 0 : index
    %0 = vector.load %arg2[%c0, %c0_0, %c0_1, %c0_2] : memref<1x4x8x8xbf16, #tpu.memory_space<vmem>>, vector<1x4x8x8xbf16>
    %1 = vector.shape_cast %0 : vector<1x4x8x8xbf16> to vector<4x8x8xbf16>
    %c0_3 = arith.constant 0 : index
    %c0_4 = arith.constant 0 : index
    %c0_5 = arith.constant 0 : index
    %c0_6 = arith.constant 0 : index
    %2 = vector.load %arg3[%c0_3, %c0_4, %c0_5, %c0_6] : memref<1x4x8x8xbf16, #tpu.memory_space<vmem>>, vector<1x4x8x8xbf16>
    %3 = vector.shape_cast %2 : vector<1x4x8x8xbf16> to vector<4x8x8xbf16>
    %c0_7 = arith.constant 0 : index
    %c0_8 = arith.constant 0 : index
    %c0_9 = arith.constant 0 : index
    %c0_10 = arith.constant 0 : index
    %4 = vector.load %arg4[%c0_7, %c0_8, %c0_9, %c0_10] : memref<1x4x8x8xbf16, #tpu.memory_space<vmem>>, vector<1x4x8x8xbf16>
    %5 = vector.shape_cast %4 : vector<1x4x8x8xbf16> to vector<4x8x8xbf16>
    %c0_11 = arith.constant 0 : index
    %c0_12 = arith.constant 0 : index
    %c0_13 = arith.constant 0 : index
    %6 = vector.load %arg5[%c0_11, %c0_12, %c0_13] : memref<4x16x8xbf16, #tpu.memory_space<vmem>>, vector<4x16x8xbf16>
    %c0_14 = arith.constant 0 : index
    %c0_15 = arith.constant 0 : index
    %c0_16 = arith.constant 0 : index
    %7 = vector.load %arg6[%c0_14, %c0_15, %c0_16] : memref<4x16x8xbf16, #tpu.memory_space<vmem>>, vector<4x16x8xbf16>
    %c0_17 = arith.constant 0 : index
    %c0_18 = arith.constant 0 : index
    %c0_19 = arith.constant 0 : index
    %8 = vector.load %arg7[%c0_17, %c0_18, %c0_19] : memref<1x8x8xi32, #tpu.memory_space<vmem>>, vector<1x8x8xi32>
    %9 = vector.shape_cast %8 : vector<1x8x8xi32> to vector<8x8xi32>
    %c0_i32 = arith.constant 0 : i32
    %10 = vector.broadcast %c0_i32 : i32 to vector<8x8xi32>
    %11 = arith.cmpi sgt, %9, %10 : vector<8x8xi32>
    %c0_20 = arith.constant 0 : index
    %c0_21 = arith.constant 0 : index
    %c0_22 = arith.constant 0 : index
    %12 = vector.load %arg8[%c0_20, %c0_21, %c0_22] : memref<8x8x16xbf16, #tpu.memory_space<vmem>>, vector<8x8x16xbf16>
    %13 = arith.extf %12 : vector<8x8x16xbf16> to vector<8x8x16xf32>
    "tpu.trace_start"() <{level = 10 : i32, message = "hqd,hkd->hqk"}> : () -> ()
    %cst = arith.constant dense<0.000000e+00> : vector<4x8x8xf32>
    %14 = tpu.matmul %1, %3, %cst {dimension_numbers = #tpu.dot_dimension_numbers<[2], [2], [1], [1], [0, 0, 0, 1, 1, 1], [0], [0]>} : vector<4x8x8xbf16>, vector<4x8x8xbf16>, vector<4x8x8xf32> -> vector<4x8x8xf32>
    "tpu.trace_stop"() : () -> ()
    "tpu.trace_start"() <{level = 10 : i32, message = "hqd,hrd->hqr"}> : () -> ()
    %cst_23 = arith.constant dense<0.000000e+00> : vector<4x8x16xf32>
    %15 = tpu.matmul %1, %6, %cst_23 {dimension_numbers = #tpu.dot_dimension_numbers<[2], [2], [1], [1], [0, 0, 0, 1, 1, 1], [0], [0]>} : vector<4x8x8xbf16>, vector<4x16x8xbf16>, vector<4x8x16xf32> -> vector<4x8x16xf32>
    "tpu.trace_stop"() : () -> ()
    "tpu.trace_start"() <{level = 10 : i32, message = "hkd,hrd->hkr"}> : () -> ()
    %cst_24 = arith.constant dense<0.000000e+00> : vector<4x8x16xf32>
    %16 = tpu.matmul %3, %7, %cst_24 {dimension_numbers = #tpu.dot_dimension_numbers<[2], [2], [1], [1], [0, 0, 0, 1, 1, 1], [0], [0]>} : vector<4x8x8xbf16>, vector<4x16x8xbf16>, vector<4x8x16xf32> -> vector<4x8x16xf32>
    "tpu.trace_stop"() : () -> ()
    %17 = vector.extract_strided_slice %15 {offsets = [0, 0, 0], sizes = [1, 8, 16], strides = [1, 1, 1]} : vector<4x8x16xf32> to vector<1x8x16xf32>
    %18 = vector.shape_cast %17 : vector<1x8x16xf32> to vector<8x16xf32>
    %19 = vector.shape_cast %18 : vector<8x16xf32> to vector<8x1x16xf32>
    %20 = vector.broadcast %19 : vector<8x1x16xf32> to vector<8x8x16xf32>
    %21 = arith.mulf %13, %20 : vector<8x8x16xf32>
    %cst_25 = arith.constant dense<0.000000e+00> : vector<8x8xf32>
    %22 = vector.multi_reduction <add>, %21, %cst_25 [2] : vector<8x8x16xf32> to vector<8x8xf32>
    %23 = vector.extract_strided_slice %16 {offsets = [0, 0, 0], sizes = [1, 8, 16], strides = [1, 1, 1]} : vector<4x8x16xf32> to vector<1x8x16xf32>
    %24 = vector.shape_cast %23 : vector<1x8x16xf32> to vector<8x16xf32>
    %25 = vector.shape_cast %24 : vector<8x16xf32> to vector<1x8x16xf32>
    %26 = vector.broadcast %25 : vector<1x8x16xf32> to vector<8x8x16xf32>
    %27 = arith.mulf %13, %26 : vector<8x8x16xf32>
    %cst_26 = arith.constant dense<0.000000e+00> : vector<8x8xf32>
    %28 = vector.multi_reduction <add>, %27, %cst_26 [2] : vector<8x8x16xf32> to vector<8x8xf32>
    %29 = arith.addf %22, %28 : vector<8x8xf32>
    %30 = vector.extract_strided_slice %15 {offsets = [1, 0, 0], sizes = [1, 8, 16], strides = [1, 1, 1]} : vector<4x8x16xf32> to vector<1x8x16xf32>
    %31 = vector.shape_cast %30 : vector<1x8x16xf32> to vector<8x16xf32>
    %32 = vector.shape_cast %31 : vector<8x16xf32> to vector<8x1x16xf32>
    %33 = vector.broadcast %32 : vector<8x1x16xf32> to vector<8x8x16xf32>
    %34 = arith.mulf %13, %33 : vector<8x8x16xf32>
    %cst_27 = arith.constant dense<0.000000e+00> : vector<8x8xf32>
    %35 = vector.multi_reduction <add>, %34, %cst_27 [2] : vector<8x8x16xf32> to vector<8x8xf32>
    %36 = vector.extract_strided_slice %16 {offsets = [1, 0, 0], sizes = [1, 8, 16], strides = [1, 1, 1]} : vector<4x8x16xf32> to vector<1x8x16xf32>
    %37 = vector.shape_cast %36 : vector<1x8x16xf32> to vector<8x16xf32>
    %38 = vector.shape_cast %37 : vector<8x16xf32> to vector<1x8x16xf32>
    %39 = vector.broadcast %38 : vector<1x8x16xf32> to vector<8x8x16xf32>
    %40 = arith.mulf %13, %39 : vector<8x8x16xf32>
    %cst_28 = arith.constant dense<0.000000e+00> : vector<8x8xf32>
    %41 = vector.multi_reduction <add>, %40, %cst_28 [2] : vector<8x8x16xf32> to vector<8x8xf32>
    %42 = arith.addf %35, %41 : vector<8x8xf32>
    %43 = vector.extract_strided_slice %15 {offsets = [2, 0, 0], sizes = [1, 8, 16], strides = [1, 1, 1]} : vector<4x8x16xf32> to vector<1x8x16xf32>
    %44 = vector.shape_cast %43 : vector<1x8x16xf32> to vector<8x16xf32>
    %45 = vector.shape_cast %44 : vector<8x16xf32> to vector<8x1x16xf32>
    %46 = vector.broadcast %45 : vector<8x1x16xf32> to vector<8x8x16xf32>
    %47 = arith.mulf %13, %46 : vector<8x8x16xf32>
    %cst_29 = arith.constant dense<0.000000e+00> : vector<8x8xf32>
    %48 = vector.multi_reduction <add>, %47, %cst_29 [2] : vector<8x8x16xf32> to vector<8x8xf32>
    %49 = vector.extract_strided_slice %16 {offsets = [2, 0, 0], sizes = [1, 8, 16], strides = [1, 1, 1]} : vector<4x8x16xf32> to vector<1x8x16xf32>
    %50 = vector.shape_cast %49 : vector<1x8x16xf32> to vector<8x16xf32>
    %51 = vector.shape_cast %50 : vector<8x16xf32> to vector<1x8x16xf32>
    %52 = vector.broadcast %51 : vector<1x8x16xf32> to vector<8x8x16xf32>
    %53 = arith.mulf %13, %52 : vector<8x8x16xf32>
    %cst_30 = arith.constant dense<0.000000e+00> : vector<8x8xf32>
    %54 = vector.multi_reduction <add>, %53, %cst_30 [2] : vector<8x8x16xf32> to vector<8x8xf32>
    %55 = arith.addf %48, %54 : vector<8x8xf32>
    %56 = vector.extract_strided_slice %15 {offsets = [3, 0, 0], sizes = [1, 8, 16], strides = [1, 1, 1]} : vector<4x8x16xf32> to vector<1x8x16xf32>
    %57 = vector.shape_cast %56 : vector<1x8x16xf32> to vector<8x16xf32>
    %58 = vector.shape_cast %57 : vector<8x16xf32> to vector<8x1x16xf32>
    %59 = vector.broadcast %58 : vector<8x1x16xf32> to vector<8x8x16xf32>
    %60 = arith.mulf %13, %59 : vector<8x8x16xf32>
    %cst_31 = arith.constant dense<0.000000e+00> : vector<8x8xf32>
    %61 = vector.multi_reduction <add>, %60, %cst_31 [2] : vector<8x8x16xf32> to vector<8x8xf32>
    %62 = vector.extract_strided_slice %16 {offsets = [3, 0, 0], sizes = [1, 8, 16], strides = [1, 1, 1]} : vector<4x8x16xf32> to vector<1x8x16xf32>
    %63 = vector.shape_cast %62 : vector<1x8x16xf32> to vector<8x16xf32>
    %64 = vector.shape_cast %63 : vector<8x16xf32> to vector<1x8x16xf32>
    %65 = vector.broadcast %64 : vector<1x8x16xf32> to vector<8x8x16xf32>
    %66 = arith.mulf %13, %65 : vector<8x8x16xf32>
    %cst_32 = arith.constant dense<0.000000e+00> : vector<8x8xf32>
    %67 = vector.multi_reduction <add>, %66, %cst_32 [2] : vector<8x8x16xf32> to vector<8x8xf32>
    %68 = arith.addf %61, %67 : vector<8x8xf32>
    %69 = vector.shape_cast %29 : vector<8x8xf32> to vector<1x8x8xf32>
    %70 = vector.shape_cast %42 : vector<8x8xf32> to vector<1x8x8xf32>
    %71 = vector.shape_cast %55 : vector<8x8xf32> to vector<1x8x8xf32>
    %72 = vector.shape_cast %68 : vector<8x8xf32> to vector<1x8x8xf32>
    %73 = tpu.concatenate %69, %70, %71, %72 in 0 : vector<1x8x8xf32>, vector<1x8x8xf32>, vector<1x8x8xf32>, vector<1x8x8xf32> -> vector<4x8x8xf32>
    %74 = arith.addf %14, %73 : vector<4x8x8xf32>
    %75 = vector.shape_cast %11 : vector<8x8xi1> to vector<1x8x8xi1>
    %cst_33 = arith.constant -3.40282347E+38 : f32
    %76 = vector.shape_cast %75 : vector<1x8x8xi1> to vector<1x8x8xi1>
    %77 = vector.broadcast %76 : vector<1x8x8xi1> to vector<4x8x8xi1>
    %78 = vector.broadcast %cst_33 : f32 to vector<4x8x8xf32>
    %79 = arith.select %77, %74, %78 : vector<4x8x8xi1>, vector<4x8x8xf32>
    %cst_34 = arith.constant dense<0xFF800000> : vector<4x8xf32>
    %80 = vector.multi_reduction <maximumf>, %79, %cst_34 [2] : vector<4x8x8xf32> to vector<4x8xf32>
    %81 = vector.shape_cast %80 : vector<4x8xf32> to vector<4x8x1xf32>
    %82 = vector.broadcast %81 : vector<4x8x1xf32> to vector<4x8x8xf32>
    %83 = arith.subf %79, %82 : vector<4x8x8xf32>
    %84 = math.exp %83 : vector<4x8x8xf32>
    %cst_35 = arith.constant dense<0.000000e+00> : vector<4x8xf32>
    %85 = vector.multi_reduction <add>, %84, %cst_35 [2] : vector<4x8x8xf32> to vector<4x8xf32>
    %86 = vector.shape_cast %85 : vector<4x8xf32> to vector<4x8x1xf32>
    %87 = vector.shape_cast %11 : vector<8x8xi1> to vector<1x8x8xi1>
    %88 = tpu.reciprocal %86 {approx = true} : vector<4x8x1xf32> -> vector<4x8x1xf32>
    %89 = vector.broadcast %88 : vector<4x8x1xf32> to vector<4x8x8xf32>
    %90 = arith.mulf %84, %89 : vector<4x8x8xf32>
    %cst_36 = arith.constant 0.000000e+00 : f32
    %91 = vector.shape_cast %87 : vector<1x8x8xi1> to vector<1x8x8xi1>
    %92 = vector.broadcast %91 : vector<1x8x8xi1> to vector<4x8x8xi1>
    %93 = vector.broadcast %cst_36 : f32 to vector<4x8x8xf32>
    %94 = arith.select %92, %90, %93 : vector<4x8x8xi1>, vector<4x8x8xf32>
    %95 = arith.truncf %94 : vector<4x8x8xf32> to vector<4x8x8xbf16>
    "tpu.trace_start"() <{level = 10 : i32, message = "hqk,hkd->hqd"}> : () -> ()
    %cst_37 = arith.constant dense<0.000000e+00> : vector<4x8x8xf32>
    %96 = tpu.matmul %95, %5, %cst_37 {dimension_numbers = #tpu.dot_dimension_numbers<[2], [1], [1], [2], [0, 0, 0, 1, 1, 2], [0], [0]>} : vector<4x8x8xbf16>, vector<4x8x8xbf16>, vector<4x8x8xf32> -> vector<4x8x8xf32>
    "tpu.trace_stop"() : () -> ()
    %97 = vector.extract_strided_slice %96 {offsets = [0, 0, 0], sizes = [1, 8, 8], strides = [1, 1, 1]} : vector<4x8x8xf32> to vector<1x8x8xf32>
    %98 = vector.shape_cast %97 : vector<1x8x8xf32> to vector<8x8xf32>
    %99 = vector.extract_strided_slice %96 {offsets = [1, 0, 0], sizes = [1, 8, 8], strides = [1, 1, 1]} : vector<4x8x8xf32> to vector<1x8x8xf32>
    %100 = vector.shape_cast %99 : vector<1x8x8xf32> to vector<8x8xf32>
    %101 = vector.extract_strided_slice %96 {offsets = [2, 0, 0], sizes = [1, 8, 8], strides = [1, 1, 1]} : vector<4x8x8xf32> to vector<1x8x8xf32>
    %102 = vector.shape_cast %101 : vector<1x8x8xf32> to vector<8x8xf32>
    %103 = vector.extract_strided_slice %96 {offsets = [3, 0, 0], sizes = [1, 8, 8], strides = [1, 1, 1]} : vector<4x8x8xf32> to vector<1x8x8xf32>
    %104 = vector.shape_cast %103 : vector<1x8x8xf32> to vector<8x8xf32>
    %105 = tpu.concatenate %98, %100, %102, %104 in 1 : vector<8x8xf32>, vector<8x8xf32>, vector<8x8xf32>, vector<8x8xf32> -> vector<8x32xf32>
    %c0_38 = arith.constant 0 : index
    %c0_39 = arith.constant 0 : index
    %c0_40 = arith.constant 0 : index
    %106 = vector.load %arg9[%c0_38, %c0_39, %c0_40] : memref<1x8x32xf32, #tpu.memory_space<vmem>>, vector<1x8x32xf32>
    %107 = vector.shape_cast %106 : vector<1x8x32xf32> to vector<8x32xf32>
    %108 = vector.shape_cast %105 : vector<8x32xf32> to vector<1x8x32xf32>
    tpu.vector_store %arg9[%c0_38, %c0_39, %c0_40], %108 {strides = array<i32>} : memref<1x8x32xf32, #tpu.memory_space<vmem>>, vector<1x8x32xf32>,
    return
  }
  func.func @transform_0(%arg0: i32, %arg1: i32) -> (i32, i32, i32, i32) {
    %c0_i32 = arith.constant 0 : i32
    %c0_i32_0 = arith.constant 0 : i32
    %c0_i32_1 = arith.constant 0 : i32
    return %arg0, %c0_i32, %arg1, %c0_i32_0 : i32, i32, i32, i32
  }
  func.func @transform_1(%arg0: i32, %arg1: i32) -> (i32, i32, i32, i32) {
    %c0_i32 = arith.constant 0 : i32
    %c0_i32_0 = arith.constant 0 : i32
    %c0_i32_1 = arith.constant 0 : i32
    %c0_i32_2 = arith.constant 0 : i32
    return %arg0, %c0_i32, %c0_i32_0, %c0_i32_1 : i32, i32, i32, i32
  }
  func.func @transform_2(%arg0: i32, %arg1: i32) -> (i32, i32, i32, i32) {
    %c0_i32 = arith.constant 0 : i32
    %c0_i32_0 = arith.constant 0 : i32
    %c0_i32_1 = arith.constant 0 : i32
    %c0_i32_2 = arith.constant 0 : i32
    return %arg0, %c0_i32, %c0_i32_0, %c0_i32_1 : i32, i32, i32, i32
  }
  func.func @transform_3(%arg0: i32, %arg1: i32) -> (i32, i32, i32) {
    %c0_i32 = arith.constant 0 : i32
    %c0_i32_0 = arith.constant 0 : i32
    %c0_i32_1 = arith.constant 0 : i32
    %c0_i32_2 = arith.constant 0 : i32
    return %c0_i32, %c0_i32_0, %c0_i32_1 : i32, i32, i32
  }
  func.func @transform_4(%arg0: i32, %arg1: i32) -> (i32, i32, i32) {
    %c0_i32 = arith.constant 0 : i32
    %c0_i32_0 = arith.constant 0 : i32
    %c0_i32_1 = arith.constant 0 : i32
    %c0_i32_2 = arith.constant 0 : i32
    return %c0_i32, %c0_i32_0, %c0_i32_1 : i32, i32, i32
  }
  func.func @transform_5(%arg0: i32, %arg1: i32) -> (i32, i32, i32) {
    %c0_i32 = arith.constant 0 : i32
    %c0_i32_0 = arith.constant 0 : i32
    return %arg0, %arg1, %c0_i32 : i32, i32, i32
  }
  func.func @transform_6(%arg0: i32, %arg1: i32) -> (i32, i32, i32) {
    %c0_i32 = arith.constant 0 : i32
    %c0_i32_0 = arith.constant 0 : i32
    %c0_i32_1 = arith.constant 0 : i32
    return %arg1, %c0_i32, %c0_i32_0 : i32, i32, i32
  }
  func.func @transform_7(%arg0: i32, %arg1: i32) -> (i32, i32, i32) {
    %c0_i32 = arith.constant 0 : i32
    %c0_i32_0 = arith.constant 0 : i32
    return %arg0, %arg1, %c0_i32 : i32, i32, i32
  }
}

</mosaic_0001>

<llo_original>
// kernel: tpu_custom_call.1
$region0: #{tpu_custom_call.1}
  #allocation0 [shape = 'u32[]', space=smem, size = 0x4, offset = 0x4, fixed_abs, tag = 'smem constant byte address 0x4 - core index']
  #allocation1 [shape = 'u32[144,128]{1,0:T(1,128)}', space=vmem, size = 0x12000, scoped, tag = 'internal scratch']
  %s0 = inlined_call_operand.hbm [shape: bf16[2,4,8,8], index: 0, kind: input, shape index: {}]
  %s1 = inlined_call_operand.hbm [shape: bf16[2,4,8,8], index: 1, kind: input, shape index: {}]
  %s2 = inlined_call_operand.hbm [shape: bf16[2,4,8,8], index: 2, kind: input, shape index: {}]
  %s3 = inlined_call_operand.hbm [shape: bf16[4,16,8], index: 3, kind: input, shape index: {}]
  %s4 = inlined_call_operand.hbm [shape: bf16[4,16,8], index: 4, kind: input, shape index: {}]
  %s5 = inlined_call_operand.hbm [shape: s32[2,8,8], index: 5, kind: input, shape index: {}]
  %s6 = inlined_call_operand.hbm [shape: bf16[8,8,16], index: 6, kind: input, shape index: {}]
  %s7 = inlined_call_operand.hbm [shape: f32[2,8,32], index: 7, kind: output, shape index: {}]
  %s8 = sld [smem:[#allocation0]]
  $region89: #{tpu_custom_call.1} parent=0
    _
  %s10 = ssub.s32 1, %s8
  %s11 = scalar_select 0, %s10, %s8
  $region1: #{tpu_custom_call.1} parent=0
    #allocation2 [shape = 'u8[16384]{0}', space=vmem, size = 0x4000, scoped, tag = 'input window, operand 0']
    #allocation3 [shape = 's32[2]{0}', space=sflag, size = 0x8, scoped, tag = 'scoped memory for tpu_custom_call.1']
    #allocation4 [shape = 's32[2]{0}', space=sflag, size = 0x8, scoped, tag = 'scoped memory for tpu_custom_call.1']
    #allocation5 [shape = 'u8[16384]{0}', space=vmem, size = 0x4000, scoped, tag = 'input window, operand 1']
    #allocation6 [shape = 's32[2]{0}', space=sflag, size = 0x8, scoped, tag = 'scoped memory for tpu_custom_call.1']
    #allocation7 [shape = 'u8[16384]{0}', space=vmem, size = 0x4000, scoped, tag = 'input window, operand 2']
    #allocation8 [shape = 'u8[16384]{0}', space=vmem, size = 0x4000, scoped, tag = 'input window, operand 3, single buffered']
    #allocation9 [shape = 's32[1]{0}', space=sflag, size = 0x4, scoped, tag = 'scoped memory for tpu_custom_call.1']
    #allocation10 [shape = 'u8[16384]{0}', space=vmem, size = 0x4000, scoped, tag = 'input window, operand 4, single buffered']
    #allocation11 [shape = 'u8[8192]{0}', space=vmem, size = 0x2000, scoped, tag = 'input window, operand 5']
    #allocation12 [shape = 's32[2]{0}', space=sflag, size = 0x8, scoped, tag = 'scoped memory for tpu_custom_call.1']
    #allocation13 [shape = 'u8[16384]{0}', space=vmem, size = 0x4000, scoped, tag = 'input window, operand 6, single buffered']
    #allocation14 [shape = 'u8[8192]{0}', space=vmem, size = 0x2000, scoped, tag = 'output window, operand 0']
    %12 = vsyncpa [#allocation3], 0
    %s13 = scalar_lea.sflag [#allocation3], 1
    %14 = vsyncpa %s13, 0
    %15 = vsyncpa [#allocation6], 0
    %s16 = scalar_lea.sflag [#allocation6], 1
    %17 = vsyncpa %s16, 0
    %18 = vsyncpa [#allocation9], 0
    %19 = vsyncpa [#allocation12], 0
    %s20 = scalar_lea.sflag [#allocation12], 1
    %21 = vsyncpa %s20, 0
    %22 = vsyncpa [#allocation4], 0
    %s23 = scalar_lea.sflag [#allocation4], 1
    %24 = vsyncpa %s23, 0
    loop: start=0, step=1, limit=4
    $region2: #{tpu_custom_call.1} parent=1 // loop_pre_header
      _
    $region3: #{tpu_custom_call.1} parent=1 // loop_header
      %s26 = sphi 0, %s30
      %p27 = scmp.ge.s32.totalorder %s26, 4
      %s33 = sphi 0, %s45
      %s34 = sphi 0, %s41
      %s35 = sphi 0, %s33
      %s36 = sphi 0, %s34
      %s37 = sphi 0, %s35
      %s38 = sphi 0, %s36
      %s50 = sphi 0, %s52
      %s53 = sphi 0, %s50
      %s54 = sphi 0, %s53
      %s70 = sphi 0, %s54
      %s76 = sphi 0, %s78
      %s79 = sphi 0, %s76
      %s80 = sphi 0, %s79
      %s96 = sphi 0, %s80
      %s102 = sphi 0, %s104
      %s105 = sphi 0, %s102
      %s106 = sphi 0, %s105
      %s122 = sphi 0, %s106
      %s126 = sphi 0, %s126
      %s128 = sphi 0, %s126
      %s129 = sphi 0, %s128
      %s143 = sphi 0, %s129
      %s147 = sphi 0, %s147
      %s149 = sphi 0, %s147
      %s150 = sphi 0, %s149
      %s164 = sphi 0, %s150
      %s172 = sphi 0, %s174
      %s175 = sphi 0, %s172
      %s176 = sphi 0, %s175
      %s192 = sphi 0, %s176
      %s198 = sphi 0, %s200
      %s201 = sphi 0, %s198
      %s202 = sphi 0, %s201
      %s218 = sphi 0, %s202
      %s226 = sphi 0, %s228
      %s229 = sphi 0, %s226
      %s230 = sphi 0, %s229
      %s246 = sphi 0, %s230
    $region4: #{tpu_custom_call.1} parent=1 // loop_header_branch
      %29 = sbr.rel (%p27) target = $region8
    $region5: #{tpu_custom_call.1} parent=1 // loop_body
      %s31 = ssub.s32 %s26, 1
      %s32 = ssub.s32 %s26, 2
      %s39 = sadd.s32 1, %s34
      %p40 = scmp.ge.s32.totalorder %s39, 1
      %s41 = scalar_select %p40, 0, %s39
      %s42 = sadd.s32 1, %s33
      %s43 = scalar_select %p40, %s42, %s33
      %p44 = scmp.ge.s32.totalorder %s43, 2
      %s45 = scalar_select %p44, 0, %s43
      %s46 = ssub.s32 %s33, %s45
      %s47 = ssub.s32 %s34, %s41
      %s48 = sor.u32 %s46, %s47
      %p49 = scmp.eq.s32.totalorder %s48, 0
      %s51 = sadd.s32 %s50, 1
      %s52 = scalar_select %p49, %s50, %s51
      %p55 = pneg %p49
      %p56 = scmp.eq.s32.totalorder %s26, 1
      %p57 = por %p55, %p56
      %p58 = scmp.ne.s32.totalorder %s50, %s53
      %p59 = scmp.eq.s32.totalorder %s26, 0
      %p60 = por %p58, %p59
      %p61 = scmp.ne.s32.totalorder %s50, %s53
      %p62 = scmp.eq.s32.totalorder %s31, 1
      %p63 = por %p61, %p62
      %p64 = scmp.ne.s32.totalorder %s53, %s54
      %p65 = scmp.eq.s32.totalorder %s31, 0
      %p66 = por %p64, %p65
      %p67 = scmp.ne.s32.totalorder %s53, %s54
      %p68 = scmp.eq.s32.totalorder %s32, 1
      %p69 = por %p67, %p68
      %p71 = scmp.ne.s32.totalorder %s54, %s70
      %p72 = scmp.eq.s32.totalorder %s32, 0
      %p73 = por %p71, %p72
      %s74 = ssub.s32 %s33, %s45
      %p75 = scmp.eq.s32.totalorder %s74, 0
      %s77 = sadd.s32 %s76, 1
      %s78 = scalar_select %p75, %s76, %s77
      %p81 = pneg %p75
      %p82 = scmp.eq.s32.totalorder %s26, 1
      %p83 = por %p81, %p82
      %p84 = scmp.ne.s32.totalorder %s76, %s79
      %p85 = scmp.eq.s32.totalorder %s26, 0
      %p86 = por %p84, %p85
      %p87 = scmp.ne.s32.totalorder %s76, %s79
      %p88 = scmp.eq.s32.totalorder %s31, 1
      %p89 = por %p87, %p88
      %p90 = scmp.ne.s32.totalorder %s79, %s80
      %p91 = scmp.eq.s32.totalorder %s31, 0
      %p92 = por %p90, %p91
      %p93 = scmp.ne.s32.totalorder %s79, %s80
      %p94 = scmp.eq.s32.totalorder %s32, 1
      %p95 = por %p93, %p94
      %p97 = scmp.ne.s32.totalorder %s80, %s96
      %p98 = scmp.eq.s32.totalorder %s32, 0
      %p99 = por %p97, %p98
      %s100 = ssub.s32 %s33, %s45
      %p101 = scmp.eq.s32.totalorder %s100, 0
      %s103 = sadd.s32 %s102, 1
      %s104 = scalar_select %p101, %s102, %s103
      %p107 = pneg %p101
      %p108 = scmp.eq.s32.totalorder %s26, 1
      %p109 = por %p107, %p108
      %p110 = scmp.ne.s32.totalorder %s102, %s105
      %p111 = scmp.eq.s32.totalorder %s26, 0
      %p112 = por %p110, %p111
      %p113 = scmp.ne.s32.totalorder %s102, %s105
      %p114 = scmp.eq.s32.totalorder %s31, 1
      %p115 = por %p113, %p114
      %p116 = scmp.ne.s32.totalorder %s105, %s106
      %p117 = scmp.eq.s32.totalorder %s31, 0
      %p118 = por %p116, %p117
      %p119 = scmp.ne.s32.totalorder %s105, %s106
      %p120 = scmp.eq.s32.totalorder %s32, 1
      %p121 = por %p119, %p120
      %p123 = scmp.ne.s32.totalorder %s106, %s122
      %p124 = scmp.eq.s32.totalorder %s32, 0
      %p125 = por %p123, %p124
      %s127 = sadd.s32 %s126, 1
      %p130 = scmp.eq.s32.totalorder %s26, 1
      %p131 = scmp.ne.s32.totalorder %s126, %s128
      %p132 = scmp.eq.s32.totalorder %s26, 0
      %p133 = por %p131, %p132
      %p134 = scmp.ne.s32.totalorder %s126, %s128
      %p135 = scmp.eq.s32.totalorder %s31, 1
      %p136 = por %p134, %p135
      %p137 = scmp.ne.s32.totalorder %s128, %s129
      %p138 = scmp.eq.s32.totalorder %s31, 0
      %p139 = por %p137, %p138
      %p140 = scmp.ne.s32.totalorder %s128, %s129
      %p141 = scmp.eq.s32.totalorder %s32, 1
      %p142 = por %p140, %p141
      %p144 = scmp.ne.s32.totalorder %s129, %s143
      %p145 = scmp.eq.s32.totalorder %s32, 0
      %p146 = por %p144, %p145
      %s148 = sadd.s32 %s147, 1
      %p151 = scmp.eq.s32.totalorder %s26, 1
      %p152 = scmp.ne.s32.totalorder %s147, %s149
      %p153 = scmp.eq.s32.totalorder %s26, 0
      %p154 = por %p152, %p153
      %p155 = scmp.ne.s32.totalorder %s147, %s149
      %p156 = scmp.eq.s32.totalorder %s31, 1
      %p157 = por %p155, %p156
      %p158 = scmp.ne.s32.totalorder %s149, %s150
      %p159 = scmp.eq.s32.totalorder %s31, 0
      %p160 = por %p158, %p159
      %p161 = scmp.ne.s32.totalorder %s149, %s150
      %p162 = scmp.eq.s32.totalorder %s32, 1
      %p163 = por %p161, %p162
      %p165 = scmp.ne.s32.totalorder %s150, %s164
      %p166 = scmp.eq.s32.totalorder %s32, 0
      %p167 = por %p165, %p166
      %s168 = ssub.s32 %s33, %s45
      %s169 = ssub.s32 %s34, %s41
      %s170 = sor.u32 %s168, %s169
      %p171 = scmp.eq.s32.totalorder %s170, 0
      %s173 = sadd.s32 %s172, 1
      %s174 = scalar_select %p171, %s172, %s173
      %p177 = pneg %p171
      %p178 = scmp.eq.s32.totalorder %s26, 1
      %p179 = por %p177, %p178
      %p180 = scmp.ne.s32.totalorder %s172, %s175
      %p181 = scmp.eq.s32.totalorder %s26, 0
      %p182 = por %p180, %p181
      %p183 = scmp.ne.s32.totalorder %s172, %s175
      %p184 = scmp.eq.s32.totalorder %s31, 1
      %p185 = por %p183, %p184
      %p186 = scmp.ne.s32.totalorder %s175, %s176
      %p187 = scmp.eq.s32.totalorder %s31, 0
      %p188 = por %p186, %p187
      %p189 = scmp.ne.s32.totalorder %s175, %s176
      %p190 = scmp.eq.s32.totalorder %s32, 1
      %p191 = por %p189, %p190
      %p193 = scmp.ne.s32.totalorder %s176, %s192
      %p194 = scmp.eq.s32.totalorder %s32, 0
      %p195 = por %p193, %p194
      %s196 = ssub.s32 %s34, %s41
      %p197 = scmp.eq.s32.totalorder %s196, 0
      %s199 = sadd.s32 %s198, 1
      %s200 = scalar_select %p197, %s198, %s199
      %p203 = pneg %p197
      %p204 = scmp.eq.s32.totalorder %s26, 1
      %p205 = por %p203, %p204
      %p206 = scmp.ne.s32.totalorder %s198, %s201
      %p207 = scmp.eq.s32.totalorder %s26, 0
      %p208 = por %p206, %p207
      %p209 = scmp.ne.s32.totalorder %s198, %s201
      %p210 = scmp.eq.s32.totalorder %s31, 1
      %p211 = por %p209, %p210
      %p212 = scmp.ne.s32.totalorder %s201, %s202
      %p213 = scmp.eq.s32.totalorder %s31, 0
      %p214 = por %p212, %p213
      %p215 = scmp.ne.s32.totalorder %s201, %s202
      %p216 = scmp.eq.s32.totalorder %s32, 1
      %p217 = por %p215, %p216
      %p219 = scmp.ne.s32.totalorder %s202, %s218
      %p220 = scmp.eq.s32.totalorder %s32, 0
      %p221 = por %p219, %p220
      %s222 = ssub.s32 %s33, %s45
      %s223 = ssub.s32 %s34, %s41
      %s224 = sor.u32 %s222, %s223
      %p225 = scmp.eq.s32.totalorder %s224, 0
      %s227 = sadd.s32 %s226, 1
      %s228 = scalar_select %p225, %s226, %s227
      %p231 = pneg %p225
      %p232 = scmp.eq.s32.totalorder %s26, 1
      %p233 = por %p231, %p232
      %p234 = scmp.ne.s32.totalorder %s226, %s229
      %p235 = scmp.eq.s32.totalorder %s26, 0
      %p236 = por %p234, %p235
      %p237 = scmp.ne.s32.totalorder %s226, %s229
      %p238 = scmp.eq.s32.totalorder %s31, 1
      %p239 = por %p237, %p238
      %p240 = scmp.ne.s32.totalorder %s229, %s230
      %p241 = scmp.eq.s32.totalorder %s31, 0
      %p242 = por %p240, %p241
      %p243 = scmp.ne.s32.totalorder %s229, %s230
      %p244 = scmp.eq.s32.totalorder %s32, 1
      %p245 = por %p243, %p244
      %p247 = scmp.ne.s32.totalorder %s230, %s246
      %p248 = scmp.eq.s32.totalorder %s32, 0
      %p249 = por %p247, %p248
      %p250 = scmp.le.s32.totalorder 1, %s26
      %p251 = scmp.lt.s32.totalorder %s26, 3
      %p252 = pnand %p250, %p251
      %p253 = pneg %p252
      // Predicated region
      $region9: #{tpu_custom_call.1} parent=5 // pred_check
        _
      $region10: #{tpu_custom_call.1} parent=5 // pred_check_branch
        %255 = sbr.rel (%p252) target = $region12
      $region11: #{tpu_custom_call.1} parent=5 // pred_region
        %s256 = ssub.s32 %s26, 1
        // Predicated region
        $region13: #{tpu_custom_call.1} parent=11 // pred_check
          %p257 = pneg %p139
        $region14: #{tpu_custom_call.1} parent=11 // pred_check_branch
          %259 = sbr.rel (%p257) target = $region16
        $region15: #{tpu_custom_call.1} parent=11 // pred_region
          %s261 = ssub.s32 512, 512
          %262 = vsyncadd [#allocation9], %s261
          %s263 = sshll.u32 [#allocation8], 4
          %s264 = int_to_ptr.vmem [resolvable:$true] %s263
          %269 = dma.hbm_to_vmem [thread:$0]  %s3, 512, %s264, [#allocation9], 64, 64, 4
        $region16: #{tpu_custom_call.1} parent=11 // pred_fallthru
          _
        // Predicated region
        $region17: #{tpu_custom_call.1} parent=11 // pred_check
          %p270 = pneg %p160
        $region18: #{tpu_custom_call.1} parent=11 // pred_check_branch
          %272 = sbr.rel (%p270) target = $region20
        $region19: #{tpu_custom_call.1} parent=11 // pred_region
          %s274 = ssub.s32 512, 512
          %275 = vsyncadd [#allocation9], %s274
          %s276 = sshll.u32 [#allocation10], 4
          %s277 = int_to_ptr.vmem [resolvable:$true] %s276
          %282 = dma.hbm_to_vmem [thread:$0]  %s4, 512, %s277, [#allocation9], 64, 64, 4
        $region20: #{tpu_custom_call.1} parent=11 // pred_fallthru
          _
        // Predicated region
        $region21: #{tpu_custom_call.1} parent=11 // pred_check
          %p283 = pneg %p214
        $region22: #{tpu_custom_call.1} parent=11 // pred_check_branch
          %285 = sbr.rel (%p283) target = $region24
        $region23: #{tpu_custom_call.1} parent=11 // pred_region
          %s286 = smul.u32 8, %s36
          %s288 = ssub.s32 512, 512
          %289 = vsyncadd [#allocation12], %s288
          %s290 = smul.addr %s286, 64
          %s291 = scalar_lea.hbm %s6, %s290
          %s292 = sshll.u32 [#allocation13], 4
          %s293 = int_to_ptr.vmem [resolvable:$true] %s292
          %298 = dma.hbm_to_vmem [thread:$0]  %s291, 512, %s293, [#allocation12], 64, 64, 4
        $region24: #{tpu_custom_call.1} parent=11 // pred_fallthru
          _
      $region12: #{tpu_custom_call.1} parent=5 // pred_fallthru
        _
      %p299 = scmp.lt.s32.totalorder %s26, 2
      // Predicated region
      $region25: #{tpu_custom_call.1} parent=5 // pred_check
        %p300 = pneg %p299
      $region26: #{tpu_custom_call.1} parent=5 // pred_check_branch
        %302 = sbr.rel (%p300) target = $region28
      $region27: #{tpu_custom_call.1} parent=5 // pred_region
        // Predicated region
        $region29: #{tpu_custom_call.1} parent=27 // pred_check
          %p303 = pneg %p60
        $region30: #{tpu_custom_call.1} parent=27 // pred_check_branch
          %305 = sbr.rel (%p303) target = $region32
        $region31: #{tpu_custom_call.1} parent=27 // pred_region
          %s306 = sand.u32 %s50, 1
          %s307 = scalar_lea.sflag [#allocation3], %s306
          %s308 = sand.u32 %s50, 1
          %s309 = smul.addr %s308, 16
          %s310 = scalar_lea.vmem [#allocation2], %s309
          %s312 = ssub.s32 256, 256
          %313 = vsyncadd %s307, %s312
          %s314 = smul.addr %s33, 4
          %s315 = sadd.s32 %s34, %s314
          %s316 = smul.addr %s315, 64
          %s317 = scalar_lea.hbm %s0, %s316
          %s318 = sshll.u32 %s310, 4
          %s319 = int_to_ptr.vmem [resolvable:$true] %s318
          %324 = dma.hbm_to_vmem [thread:$0]  %s317, 256, %s319, %s307, 64, 64, 4
        $region32: #{tpu_custom_call.1} parent=27 // pred_fallthru
          _
        // Predicated region
        $region33: #{tpu_custom_call.1} parent=27 // pred_check
          %p325 = pneg %p86
        $region34: #{tpu_custom_call.1} parent=27 // pred_check_branch
          %327 = sbr.rel (%p325) target = $region36
        $region35: #{tpu_custom_call.1} parent=27 // pred_region
          %s328 = sand.u32 %s26, 1
          %s329 = scalar_lea.sflag [#allocation6], %s328
          %s330 = sand.u32 %s76, 1
          %s331 = smul.addr %s330, 16
          %s332 = scalar_lea.vmem [#allocation5], %s331
          %s334 = ssub.s32 256, 256
          %335 = vsyncadd %s329, %s334
          %s336 = smul.addr %s33, 4
          %s337 = smul.addr %s336, 64
          %s338 = scalar_lea.hbm %s1, %s337
          %s339 = sshll.u32 %s332, 4
          %s340 = int_to_ptr.vmem [resolvable:$true] %s339
          %345 = dma.hbm_to_vmem [thread:$0]  %s338, 256, %s340, %s329, 64, 64, 4
        $region36: #{tpu_custom_call.1} parent=27 // pred_fallthru
          _
        // Predicated region
        $region37: #{tpu_custom_call.1} parent=27 // pred_check
          %p346 = pneg %p112
        $region38: #{tpu_custom_call.1} parent=27 // pred_check_branch
          %348 = sbr.rel (%p346) target = $region40
        $region39: #{tpu_custom_call.1} parent=27 // pred_region
          %s349 = sand.u32 %s26, 1
          %s350 = scalar_lea.sflag [#allocation6], %s349
          %s351 = sand.u32 %s102, 1
          %s352 = smul.addr %s351, 16
          %s353 = scalar_lea.vmem [#allocation7], %s352
          %s355 = ssub.s32 256, 256
          %356 = vsyncadd %s350, %s355
          %s357 = smul.addr %s33, 4
          %s358 = smul.addr %s357, 64
          %s359 = scalar_lea.hbm %s2, %s358
          %s360 = sshll.u32 %s353, 4
          %s361 = int_to_ptr.vmem [resolvable:$true] %s360
          %366 = dma.hbm_to_vmem [thread:$0]  %s359, 256, %s361, %s350, 64, 64, 4
        $region40: #{tpu_custom_call.1} parent=27 // pred_fallthru
          _
        // Predicated region
        $region41: #{tpu_custom_call.1} parent=27 // pred_check
          %p367 = pneg %p182
        $region42: #{tpu_custom_call.1} parent=27 // pred_check_branch
          %369 = sbr.rel (%p367) target = $region44
        $region43: #{tpu_custom_call.1} parent=27 // pred_region
          %s370 = sand.u32 %s26, 1
          %s371 = scalar_lea.sflag [#allocation12], %s370
          %s372 = sand.u32 %s172, 1
          %s373 = smul.addr %s372, 8
          %s374 = scalar_lea.vmem [#allocation11], %s373
          %s376 = ssub.s32 128, 128
          %377 = vsyncadd %s371, %s376
          %s378 = sadd.s32 %s34, %s33
          %s379 = smul.addr %s378, 128
          %s380 = scalar_lea.hbm %s5, %s379
          %s382 = sshll.u32 %s374, 4
          %s383 = int_to_ptr.vmem [resolvable:$true] %s382
          %385 = dma.hbm_to_vmem [thread:$0]  %s380, 128, %s383, %s371
        $region44: #{tpu_custom_call.1} parent=27 // pred_fallthru
          _
      $region28: #{tpu_custom_call.1} parent=5 // pred_fallthru
        _
      %p386 = scmp.le.s32.totalorder 1, %s26
      %p387 = scmp.lt.s32.totalorder %s26, 3
      %p388 = pnand %p386, %p387
      %p389 = pneg %p388
      // Predicated region
      $region45: #{tpu_custom_call.1} parent=5 // pred_check
        _
      $region46: #{tpu_custom_call.1} parent=5 // pred_check_branch
        %391 = sbr.rel (%p388) target = $region48
      $region47: #{tpu_custom_call.1} parent=5 // pred_region
        %s392 = ssub.s32 %s26, 1
        %s393 = sand.u32 %s53, 1
        %s394 = scalar_lea.sflag [#allocation3], %s393
        %s395 = sand.u32 %s53, 1
        %s396 = smul.addr %s395, 16
        %s397 = scalar_lea.vmem [#allocation2], %s396
        // Predicated region
        $region49: #{tpu_custom_call.1} parent=47 // pred_check
          %p398 = pneg %p66
        $region50: #{tpu_custom_call.1} parent=47 // pred_check_branch
          %400 = sbr.rel (%p398) target = $region52
        $region51: #{tpu_custom_call.1} parent=47 // pred_region
          %401 = dma.done %s394, 256
        $region52: #{tpu_custom_call.1} parent=47 // pred_fallthru
          _
        %s402 = sand.u32 %s31, 1
        %s403 = scalar_lea.sflag [#allocation6], %s402
        %s404 = sand.u32 %s79, 1
        %s405 = smul.addr %s404, 16
        %s406 = scalar_lea.vmem [#allocation5], %s405
        // Predicated region
        $region53: #{tpu_custom_call.1} parent=47 // pred_check
          %p407 = pneg %p92
        $region54: #{tpu_custom_call.1} parent=47 // pred_check_branch
          %409 = sbr.rel (%p407) target = $region56
        $region55: #{tpu_custom_call.1} parent=47 // pred_region
          %410 = dma.done %s403, 256
        $region56: #{tpu_custom_call.1} parent=47 // pred_fallthru
          _
        %s411 = sand.u32 %s31, 1
        %s412 = scalar_lea.sflag [#allocation6], %s411
        %s413 = sand.u32 %s105, 1
        %s414 = smul.addr %s413, 16
        %s415 = scalar_lea.vmem [#allocation7], %s414
        // Predicated region
        $region57: #{tpu_custom_call.1} parent=47 // pred_check
          %p416 = pneg %p118
        $region58: #{tpu_custom_call.1} parent=47 // pred_check_branch
          %418 = sbr.rel (%p416) target = $region60
        $region59: #{tpu_custom_call.1} parent=47 // pred_region
          %419 = dma.done %s412, 256
        $region60: #{tpu_custom_call.1} parent=47 // pred_fallthru
          _
        // Predicated region
        $region61: #{tpu_custom_call.1} parent=47 // pred_check
          %p420 = pneg %p139
        $region62: #{tpu_custom_call.1} parent=47 // pred_check_branch
          %422 = sbr.rel (%p420) target = $region64
        $region63: #{tpu_custom_call.1} parent=47 // pred_region
          %423 = dma.done [#allocation9], 512
        $region64: #{tpu_custom_call.1} parent=47 // pred_fallthru
          _
        // Predicated region
        $region65: #{tpu_custom_call.1} parent=47 // pred_check
          %p424 = pneg %p160
        $region66: #{tpu_custom_call.1} parent=47 // pred_check_branch
          %426 = sbr.rel (%p424) target = $region68
        $region67: #{tpu_custom_call.1} parent=47 // pred_region
          %427 = dma.done [#allocation9], 512
        $region68: #{tpu_custom_call.1} parent=47 // pred_fallthru
          _
        %s428 = sand.u32 %s31, 1
        %s429 = scalar_lea.sflag [#allocation12], %s428
        %s430 = sand.u32 %s175, 1
        %s431 = smul.addr %s430, 8
        %s432 = scalar_lea.vmem [#allocation11], %s431
        // Predicated region
        $region69: #{tpu_custom_call.1} parent=47 // pred_check
          %p433 = pneg %p188
        $region70: #{tpu_custom_call.1} parent=47 // pred_check_branch
          %435 = sbr.rel (%p433) target = $region72
        $region71: #{tpu_custom_call.1} parent=47 // pred_region
          %436 = dma.done %s429, 128
        $region72: #{tpu_custom_call.1} parent=47 // pred_fallthru
          _
        // Predicated region
        $region73: #{tpu_custom_call.1} parent=47 // pred_check
          %p437 = pneg %p214
        $region74: #{tpu_custom_call.1} parent=47 // pred_check_branch
          %439 = sbr.rel (%p437) target = $region76
        $region75: #{tpu_custom_call.1} parent=47 // pred_region
          %440 = dma.done [#allocation12], 512
        $region76: #{tpu_custom_call.1} parent=47 // pred_fallthru
          _
        %s441 = sand.u32 %s53, 1
        %s442 = scalar_lea.sflag [#allocation3], %s441
        %s443 = sand.u32 %s53, 1
        %s444 = smul.addr %s443, 16
        %s445 = scalar_lea.vmem [#allocation2], %s444
        %p446 = pneg %p66
        %p447 = pneg %p63
        %s448 = sand.u32 %s31, 1
        %s449 = scalar_lea.sflag [#allocation6], %s448
        %s450 = sand.u32 %s79, 1
        %s451 = smul.addr %s450, 16
        %s452 = scalar_lea.vmem [#allocation5], %s451
        %p453 = pneg %p92
        %p454 = pneg %p89
        %s455 = sand.u32 %s31, 1
        %s456 = scalar_lea.sflag [#allocation6], %s455
        %s457 = sand.u32 %s105, 1
        %s458 = smul.addr %s457, 16
        %s459 = scalar_lea.vmem [#allocation7], %s458
        %p460 = pneg %p118
        %p461 = pneg %p115
        %p462 = pneg %p139
        %p463 = pneg %p136
        %p464 = pneg %p160
        %p465 = pneg %p157
        %s466 = sand.u32 %s31, 1
        %s467 = scalar_lea.sflag [#allocation12], %s466
        %s468 = sand.u32 %s175, 1
        %s469 = smul.addr %s468, 8
        %s470 = scalar_lea.vmem [#allocation11], %s469
        %p471 = pneg %p188
        %p472 = pneg %p185
        %p473 = pneg %p214
        %p474 = pneg %p211
        %p475 = pneg %p242
        %p476 = pneg %p239
        %s477 = sand.u32 %s229, 1
        %s478 = scalar_lea.sflag [#allocation4], %s477
        %s479 = sand.u32 %s229, 1
        %s480 = smul.addr %s479, 8
        %s481 = scalar_lea.vmem [#allocation14], %s480
        %s482 = smul.u32 8, %s36
        %v484 = vld [vmem:[%s397] sm:$0xf]
        %v485 = vld [vmem:[%s397 + $0x4] sm:$0xf]
        %v486 = vld [vmem:[%s397 + $0x8] sm:$0xf]
        %v487 = vld [vmem:[%s397 + $0xc] sm:$0xf]
        %v488 = vld [vmem:[%s406] sm:$0xf]
        %v489 = vld [vmem:[%s406 + $0x4] sm:$0xf]
        %v490 = vld [vmem:[%s406 + $0x8] sm:$0xf]
        %v491 = vld [vmem:[%s406 + $0xc] sm:$0xf]
        %v492 = vld [vmem:[%s415] sm:$0xf]
        %v493 = vld [vmem:[%s415 + $0x4] sm:$0xf]
        %v494 = vld [vmem:[%s415 + $0x8] sm:$0xf]
        %v495 = vld [vmem:[%s415 + $0xc] sm:$0xf]
        %v496 = vld [vmem:[#allocation8] sm:$0xf]
        %v497 = vld [vmem:[#allocation8 + $0x4] sm:$0xf]
        %v498 = vld [vmem:[#allocation8 + $0x8] sm:$0xf]
        %v499 = vld [vmem:[#allocation8 + $0xc] sm:$0xf]
        %v500 = vld [vmem:[#allocation8 + $0x10] sm:$0xf]
        %v501 = vld [vmem:[#allocation8 + $0x14] sm:$0xf]
        %v502 = vld [vmem:[#allocation8 + $0x18] sm:$0xf]
        %v503 = vld [vmem:[#allocation8 + $0x1c] sm:$0xf]
        %v504 = vld [vmem:[#allocation10] sm:$0xf]
        %v505 = vld [vmem:[#allocation10 + $0x4] sm:$0xf]
        %v506 = vld [vmem:[#allocation10 + $0x8] sm:$0xf]
        %v507 = vld [vmem:[#allocation10 + $0xc] sm:$0xf]
        %v508 = vld [vmem:[#allocation10 + $0x10] sm:$0xf]
        %v509 = vld [vmem:[#allocation10 + $0x14] sm:$0xf]
        %v510 = vld [vmem:[#allocation10 + $0x18] sm:$0xf]
        %v511 = vld [vmem:[#allocation10 + $0x1c] sm:$0xf]
        %v512 = vld [vmem:[%s432] sm:$0xff]
        %vm513 = vcmp.gt.s32.totalorder %v512, 0
        %v514 = vld [vmem:[#allocation13] sm:$0xf]
        %v515 = vld [vmem:[#allocation13 + $0x4] sm:$0xf]
        %v516 = vld [vmem:[#allocation13 + $0x8] sm:$0xf]
        %v517 = vld [vmem:[#allocation13 + $0xc] sm:$0xf]
        %v518 = vld [vmem:[#allocation13 + $0x10] sm:$0xf]
        %v519 = vld [vmem:[#allocation13 + $0x14] sm:$0xf]
        %v520 = vld [vmem:[#allocation13 + $0x18] sm:$0xf]
        %v521 = vld [vmem:[#allocation13 + $0x1c] sm:$0xf]
        %v522 = vunpack.c.l.bf16 %v514
        %v523 = vunpack.c.l.bf16 %v515
        %v524 = vunpack.c.l.bf16 %v516
        %v525 = vunpack.c.l.bf16 %v517
        %v526 = vunpack.c.l.bf16 %v518
        %v527 = vunpack.c.l.bf16 %v519
        %v528 = vunpack.c.l.bf16 %v520
        %v529 = vunpack.c.l.bf16 %v521
        %v532 = vunpack.c.l.b16 %v496
        %v533 = vunpack.c.l.b16 %v497
        %v534 = vpack.c.b16 %v533, %v532
        %vm535 = vcmask 64512
        %v537 = vsel %vm535, %v484, 0
        %v540 = vsel %vm535, %v534, 0
        %542 = vmatprep.subr.bf16.mxu0 0
        %543 = vmatpush1.bf16.xpose.msra.mxu0 %v540
        %544 = vmatprep.subr.bf16.mxu0 0
        %545 = vmatpush1.bf16.xpose.msra.mxu0 0
        %546 = vmatprep.subr.bf16.mxu0 0
        %547 = vmatpush1.bf16.xpose.msra.mxu0 0
        %548 = vmatprep.subr.bf16.mxu0 0
        %549 = vmatpush1.bf16.xpose.msra.mxu0 0
        %550 = vmatprep.subr.bf16.mxu0 0
        %551 = vmatpush1.bf16.xpose.msra.mxu0 0
        %552 = vmatprep.subr.bf16.mxu0 0
        %553 = vmatpush1.bf16.xpose.msra.mxu0 0
        %554 = vmatprep.subr.bf16.mxu0 0
        %555 = vmatpush1.bf16.xpose.msra.mxu0 0
        %556 = vmatprep.subr.bf16.mxu0 0
        %557 = vmatpush1.bf16.xpose.msra.mxu0 0
        %558 = vmatprep.subr.bf16.mxu0 0
        %559 = vmatpush1.bf16.xpose.msra.mxu0 0
        %560 = vmatprep.subr.bf16.mxu0 0
        %561 = vmatpush1.bf16.xpose.msra.mxu0 0
        %562 = vmatprep.subr.bf16.mxu0 0
        %563 = vmatpush1.bf16.xpose.msra.mxu0 0
        %564 = vmatprep.subr.bf16.mxu0 0
        %565 = vmatpush1.bf16.xpose.msra.mxu0 0
        %566 = vmatprep.subr.bf16.mxu0 0
        %567 = vmatpush1.bf16.xpose.msra.mxu0 0
        %568 = vmatprep.subr.bf16.mxu0 0
        %569 = vmatpush1.bf16.xpose.msra.mxu0 0
        %570 = vmatprep.subr.bf16.mxu0 0
        %571 = vmatpush1.bf16.xpose.msra.mxu0 0
        %572 = vmatprep.subr.bf16.mxu0 0
        %573 = vmatpush1.bf16.xpose.msra.mxu0 0
        %574 = vmatprep.mubr.bf16.mxu0 0
        %575 = vmatmul.mubr.bf16.gmra.mrb[0].mxu0 %v537
        %v576 = vpop.f32.mrb[0].mxu0
        %v577 = vadd.f32 0.0, %v576
        %v578 = vpop.f32.mrb[0].mxu0
        %v579 = vpop.f32.mrb[0].mxu0
        %v580 = vpop.f32.mrb[0].mxu0
        %581 = vdwg.mxu0
        %v584 = vunpack.c.l.b16 %v498
        %v585 = vunpack.c.l.b16 %v499
        %v586 = vpack.c.b16 %v585, %v584
        %v588 = vsel %vm535, %v485, 0
        %v591 = vsel %vm535, %v586, 0
        %593 = vmatprep.subr.bf16.mxu0 0
        %594 = vmatpush1.bf16.xpose.msra.mxu0 %v591
        %595 = vmatprep.subr.bf16.mxu0 0
        %596 = vmatpush1.bf16.xpose.msra.mxu0 0
        %597 = vmatprep.subr.bf16.mxu0 0
        %598 = vmatpush1.bf16.xpose.msra.mxu0 0
        %599 = vmatprep.subr.bf16.mxu0 0
        %600 = vmatpush1.bf16.xpose.msra.mxu0 0
        %601 = vmatprep.subr.bf16.mxu0 0
        %602 = vmatpush1.bf16.xpose.msra.mxu0 0
        %603 = vmatprep.subr.bf16.mxu0 0
        %604 = vmatpush1.bf16.xpose.msra.mxu0 0
        %605 = vmatprep.subr.bf16.mxu0 0
        %606 = vmatpush1.bf16.xpose.msra.mxu0 0
        %607 = vmatprep.subr.bf16.mxu0 0
        %608 = vmatpush1.bf16.xpose.msra.mxu0 0
        %609 = vmatprep.subr.bf16.mxu0 0
        %610 = vmatpush1.bf16.xpose.msra.mxu0 0
        %611 = vmatprep.subr.bf16.mxu0 0
        %612 = vmatpush1.bf16.xpose.msra.mxu0 0
        %613 = vmatprep.subr.bf16.mxu0 0
        %614 = vmatpush1.bf16.xpose.msra.mxu0 0
        %615 = vmatprep.subr.bf16.mxu0 0
        %616 = vmatpush1.bf16.xpose.msra.mxu0 0
        %617 = vmatprep.subr.bf16.mxu0 0
        %618 = vmatpush1.bf16.xpose.msra.mxu0 0
        %619 = vmatprep.subr.bf16.mxu0 0
        %620 = vmatpush1.bf16.xpose.msra.mxu0 0
        %621 = vmatprep.subr.bf16.mxu0 0
        %622 = vmatpush1.bf16.xpose.msra.mxu0 0
        %623 = vmatprep.subr.bf16.mxu0 0
        %624 = vmatpush1.bf16.xpose.msra.mxu0 0
        %625 = vmatprep.mubr.bf16.mxu0 0
        %626 = vmatmul.mubr.bf16.gmra.mrb[0].mxu0 %v588
        %v627 = vpop.f32.mrb[0].mxu0
        %v628 = vadd.f32 0.0, %v627
        %v629 = vpop.f32.mrb[0].mxu0
        %v630 = vpop.f32.mrb[0].mxu0
        %v631 = vpop.f32.mrb[0].mxu0
        %632 = vdwg.mxu0
        %v635 = vunpack.c.l.b16 %v500
        %v636 = vunpack.c.l.b16 %v501
        %v637 = vpack.c.b16 %v636, %v635
        %v639 = vsel %vm535, %v486, 0
        %v642 = vsel %vm535, %v637, 0
        %644 = vmatprep.subr.bf16.mxu0 0
        %645 = vmatpush1.bf16.xpose.msra.mxu0 %v642
        %646 = vmatprep.subr.bf16.mxu0 0
        %647 = vmatpush1.bf16.xpose.msra.mxu0 0
        %648 = vmatprep.subr.bf16.mxu0 0
        %649 = vmatpush1.bf16.xpose.msra.mxu0 0
        %650 = vmatprep.subr.bf16.mxu0 0
        %651 = vmatpush1.bf16.xpose.msra.mxu0 0
        %652 = vmatprep.subr.bf16.mxu0 0
        %653 = vmatpush1.bf16.xpose.msra.mxu0 0
        %654 = vmatprep.subr.bf16.mxu0 0
        %655 = vmatpush1.bf16.xpose.msra.mxu0 0
        %656 = vmatprep.subr.bf16.mxu0 0
        %657 = vmatpush1.bf16.xpose.msra.mxu0 0
        %658 = vmatprep.subr.bf16.mxu0 0
        %659 = vmatpush1.bf16.xpose.msra.mxu0 0
        %660 = vmatprep.subr.bf16.mxu0 0
        %661 = vmatpush1.bf16.xpose.msra.mxu0 0
        %662 = vmatprep.subr.bf16.mxu0 0
        %663 = vmatpush1.bf16.xpose.msra.mxu0 0
        %664 = vmatprep.subr.bf16.mxu0 0
        %665 = vmatpush1.bf16.xpose.msra.mxu0 0
        %666 = vmatprep.subr.bf16.mxu0 0
        %667 = vmatpush1.bf16.xpose.msra.mxu0 0
        %668 = vmatprep.subr.bf16.mxu0 0
        %669 = vmatpush1.bf16.xpose.msra.mxu0 0
        %670 = vmatprep.subr.bf16.mxu0 0
        %671 = vmatpush1.bf16.xpose.msra.mxu0 0
        %672 = vmatprep.subr.bf16.mxu0 0
        %673 = vmatpush1.bf16.xpose.msra.mxu0 0
        %674 = vmatprep.subr.bf16.mxu0 0
        %675 = vmatpush1.bf16.xpose.msra.mxu0 0
        %676 = vmatprep.mubr.bf16.mxu0 0
        %677 = vmatmul.mubr.bf16.gmra.mrb[0].mxu0 %v639
        %v678 = vpop.f32.mrb[0].mxu0
        %v679 = vadd.f32 0.0, %v678
        %v680 = vpop.f32.mrb[0].mxu0
        %v681 = vpop.f32.mrb[0].mxu0
        %v682 = vpop.f32.mrb[0].mxu0
        %683 = vdwg.mxu0
        %v686 = vunpack.c.l.b16 %v502
        %v687 = vunpack.c.l.b16 %v503
        %v688 = vpack.c.b16 %v687, %v686
        %v690 = vsel %vm535, %v487, 0
        %v693 = vsel %vm535, %v688, 0
        %695 = vmatprep.subr.bf16.mxu0 0
        %696 = vmatpush1.bf16.xpose.msra.mxu0 %v693
        %697 = vmatprep.subr.bf16.mxu0 0
        %698 = vmatpush1.bf16.xpose.msra.mxu0 0
        %699 = vmatprep.subr.bf16.mxu0 0
        %700 = vmatpush1.bf16.xpose.msra.mxu0 0
        %701 = vmatprep.subr.bf16.mxu0 0
        %702 = vmatpush1.bf16.xpose.msra.mxu0 0
        %703 = vmatprep.subr.bf16.mxu0 0
        %704 = vmatpush1.bf16.xpose.msra.mxu0 0
        %705 = vmatprep.subr.bf16.mxu0 0
        %706 = vmatpush1.bf16.xpose.msra.mxu0 0
        %707 = vmatprep.subr.bf16.mxu0 0
        %708 = vmatpush1.bf16.xpose.msra.mxu0 0
        %709 = vmatprep.subr.bf16.mxu0 0
        %710 = vmatpush1.bf16.xpose.msra.mxu0 0
        %711 = vmatprep.subr.bf16.mxu0 0
        %712 = vmatpush1.bf16.xpose.msra.mxu0 0
        %713 = vmatprep.subr.bf16.mxu0 0
        %714 = vmatpush1.bf16.xpose.msra.mxu0 0
        %715 = vmatprep.subr.bf16.mxu0 0
        %716 = vmatpush1.bf16.xpose.msra.mxu0 0
        %717 = vmatprep.subr.bf16.mxu0 0
        %718 = vmatpush1.bf16.xpose.msra.mxu0 0
        %719 = vmatprep.subr.bf16.mxu0 0
        %720 = vmatpush1.bf16.xpose.msra.mxu0 0
        %721 = vmatprep.subr.bf16.mxu0 0
        %722 = vmatpush1.bf16.xpose.msra.mxu0 0
        %723 = vmatprep.subr.bf16.mxu0 0
        %724 = vmatpush1.bf16.xpose.msra.mxu0 0
        %725 = vmatprep.subr.bf16.mxu0 0
        %726 = vmatpush1.bf16.xpose.msra.mxu0 0
        %727 = vmatprep.mubr.bf16.mxu0 0
        %728 = vmatmul.mubr.bf16.gmra.mrb[0].mxu0 %v690
        %v729 = vpop.f32.mrb[0].mxu0
        %v730 = vadd.f32 0.0, %v729
        %v731 = vpop.f32.mrb[0].mxu0
        %v732 = vpop.f32.mrb[0].mxu0
        %v733 = vpop.f32.mrb[0].mxu0
        %734 = vdwg.mxu0
        %v737 = vunpack.c.l.b16 %v504
        %v738 = vunpack.c.l.b16 %v505
        %v739 = vpack.c.b16 %v738, %v737
        %v741 = vsel %vm535, %v488, 0
        %v744 = vsel %vm535, %v739, 0
        %746 = vmatprep.subr.bf16.mxu0 0
        %747 = vmatpush1.bf16.xpose.msra.mxu0 %v744
        %748 = vmatprep.subr.bf16.mxu0 0
        %749 = vmatpush1.bf16.xpose.msra.mxu0 0
        %750 = vmatprep.subr.bf16.mxu0 0
        %751 = vmatpush1.bf16.xpose.msra.mxu0 0
        %752 = vmatprep.subr.bf16.mxu0 0
        %753 = vmatpush1.bf16.xpose.msra.mxu0 0
        %754 = vmatprep.subr.bf16.mxu0 0
        %755 = vmatpush1.bf16.xpose.msra.mxu0 0
        %756 = vmatprep.subr.bf16.mxu0 0
        %757 = vmatpush1.bf16.xpose.msra.mxu0 0
        %758 = vmatprep.subr.bf16.mxu0 0
        %759 = vmatpush1.bf16.xpose.msra.mxu0 0
        %760 = vmatprep.subr.bf16.mxu0 0
        %761 = vmatpush1.bf16.xpose.msra.mxu0 0
        %762 = vmatprep.subr.bf16.mxu0 0
        %763 = vmatpush1.bf16.xpose.msra.mxu0 0
        %764 = vmatprep.subr.bf16.mxu0 0
        %765 = vmatpush1.bf16.xpose.msra.mxu0 0
        %766 = vmatprep.subr.bf16.mxu0 0
        %767 = vmatpush1.bf16.xpose.msra.mxu0 0
        %768 = vmatprep.subr.bf16.mxu0 0
        %769 = vmatpush1.bf16.xpose.msra.mxu0 0
        %770 = vmatprep.subr.bf16.mxu0 0
        %771 = vmatpush1.bf16.xpose.msra.mxu0 0
        %772 = vmatprep.subr.bf16.mxu0 0
        %773 = vmatpush1.bf16.xpose.msra.mxu0 0
        %774 = vmatprep.subr.bf16.mxu0 0
        %775 = vmatpush1.bf16.xpose.msra.mxu0 0
        %776 = vmatprep.subr.bf16.mxu0 0
        %777 = vmatpush1.bf16.xpose.msra.mxu0 0
        %778 = vmatprep.mubr.bf16.mxu0 0
        %779 = vmatmul.mubr.bf16.gmra.mrb[0].mxu0 %v741
        %v780 = vpop.f32.mrb[0].mxu0
        %v781 = vadd.f32 0.0, %v780
        %v782 = vpop.f32.mrb[0].mxu0
        %v783 = vpop.f32.mrb[0].mxu0
        %v784 = vpop.f32.mrb[0].mxu0
        %785 = vdwg.mxu0
        %v788 = vunpack.c.l.b16 %v506
        %v789 = vunpack.c.l.b16 %v507
        %v790 = vpack.c.b16 %v789, %v788
        %v792 = vsel %vm535, %v489, 0
        %v795 = vsel %vm535, %v790, 0
        %797 = vmatprep.subr.bf16.mxu0 0
        %798 = vmatpush1.bf16.xpose.msra.mxu0 %v795
        %799 = vmatprep.subr.bf16.mxu0 0
        %800 = vmatpush1.bf16.xpose.msra.mxu0 0
        %801 = vmatprep.subr.bf16.mxu0 0
        %802 = vmatpush1.bf16.xpose.msra.mxu0 0
        %803 = vmatprep.subr.bf16.mxu0 0
        %804 = vmatpush1.bf16.xpose.msra.mxu0 0
        %805 = vmatprep.subr.bf16.mxu0 0
        %806 = vmatpush1.bf16.xpose.msra.mxu0 0
        %807 = vmatprep.subr.bf16.mxu0 0
        %808 = vmatpush1.bf16.xpose.msra.mxu0 0
        %809 = vmatprep.subr.bf16.mxu0 0
        %810 = vmatpush1.bf16.xpose.msra.mxu0 0
        %811 = vmatprep.subr.bf16.mxu0 0
        %812 = vmatpush1.bf16.xpose.msra.mxu0 0
        %813 = vmatprep.subr.bf16.mxu0 0
        %814 = vmatpush1.bf16.xpose.msra.mxu0 0
        %815 = vmatprep.subr.bf16.mxu0 0
        %816 = vmatpush1.bf16.xpose.msra.mxu0 0
        %817 = vmatprep.subr.bf16.mxu0 0
        %818 = vmatpush1.bf16.xpose.msra.mxu0 0
        %819 = vmatprep.subr.bf16.mxu0 0
        %820 = vmatpush1.bf16.xpose.msra.mxu0 0
        %821 = vmatprep.subr.bf16.mxu0 0
        %822 = vmatpush1.bf16.xpose.msra.mxu0 0
        %823 = vmatprep.subr.bf16.mxu0 0
        %824 = vmatpush1.bf16.xpose.msra.mxu0 0
        %825 = vmatprep.subr.bf16.mxu0 0
        %826 = vmatpush1.bf16.xpose.msra.mxu0 0
        %827 = vmatprep.subr.bf16.mxu0 0
        %828 = vmatpush1.bf16.xpose.msra.mxu0 0
        %829 = vmatprep.mubr.bf16.mxu0 0
        %830 = vmatmul.mubr.bf16.gmra.mrb[0].mxu0 %v792
        %v831 = vpop.f32.mrb[0].mxu0
        %v832 = vadd.f32 0.0, %v831
        %v833 = vpop.f32.mrb[0].mxu0
        %v834 = vpop.f32.mrb[0].mxu0
        %v835 = vpop.f32.mrb[0].mxu0
        %836 = vdwg.mxu0
        %v839 = vunpack.c.l.b16 %v508
        %v840 = vunpack.c.l.b16 %v509
        %v841 = vpack.c.b16 %v840, %v839
        %v843 = vsel %vm535, %v490, 0
        %v846 = vsel %vm535, %v841, 0
        %848 = vmatprep.subr.bf16.mxu0 0
        %849 = vmatpush1.bf16.xpose.msra.mxu0 %v846
        %850 = vmatprep.subr.bf16.mxu0 0
        %851 = vmatpush1.bf16.xpose.msra.mxu0 0
        %852 = vmatprep.subr.bf16.mxu0 0
        %853 = vmatpush1.bf16.xpose.msra.mxu0 0
        %854 = vmatprep.subr.bf16.mxu0 0
        %855 = vmatpush1.bf16.xpose.msra.mxu0 0
        %856 = vmatprep.subr.bf16.mxu0 0
        %857 = vmatpush1.bf16.xpose.msra.mxu0 0
        %858 = vmatprep.subr.bf16.mxu0 0
        %859 = vmatpush1.bf16.xpose.msra.mxu0 0
        %860 = vmatprep.subr.bf16.mxu0 0
        %861 = vmatpush1.bf16.xpose.msra.mxu0 0
        %862 = vmatprep.subr.bf16.mxu0 0
        %863 = vmatpush1.bf16.xpose.msra.mxu0 0
        %864 = vmatprep.subr.bf16.mxu0 0
        %865 = vmatpush1.bf16.xpose.msra.mxu0 0
        %866 = vmatprep.subr.bf16.mxu0 0
        %867 = vmatpush1.bf16.xpose.msra.mxu0 0
        %868 = vmatprep.subr.bf16.mxu0 0
        %869 = vmatpush1.bf16.xpose.msra.mxu0 0
        %870 = vmatprep.subr.bf16.mxu0 0
        %871 = vmatpush1.bf16.xpose.msra.mxu0 0
        %872 = vmatprep.subr.bf16.mxu0 0
        %873 = vmatpush1.bf16.xpose.msra.mxu0 0
        %874 = vmatprep.subr.bf16.mxu0 0
        %875 = vmatpush1.bf16.xpose.msra.mxu0 0
        %876 = vmatprep.subr.bf16.mxu0 0
        %877 = vmatpush1.bf16.xpose.msra.mxu0 0
        %878 = vmatprep.subr.bf16.mxu0 0
        %879 = vmatpush1.bf16.xpose.msra.mxu0 0
        %880 = vmatprep.mubr.bf16.mxu0 0
        %881 = vmatmul.mubr.bf16.gmra.mrb[0].mxu0 %v843
        %v882 = vpop.f32.mrb[0].mxu0
        %v883 = vadd.f32 0.0, %v882
        %v884 = vpop.f32.mrb[0].mxu0
        %v885 = vpop.f32.mrb[0].mxu0
        %v886 = vpop.f32.mrb[0].mxu0
        %887 = vdwg.mxu0
        %v890 = vunpack.c.l.b16 %v510
        %v891 = vunpack.c.l.b16 %v511
        %v892 = vpack.c.b16 %v891, %v890
        %v894 = vsel %vm535, %v491, 0
        %v897 = vsel %vm535, %v892, 0
        %899 = vmatprep.subr.bf16.mxu0 0
        %900 = vmatpush1.bf16.xpose.msra.mxu0 %v897
        %901 = vmatprep.subr.bf16.mxu0 0
        %902 = vmatpush1.bf16.xpose.msra.mxu0 0
        %903 = vmatprep.subr.bf16.mxu0 0
        %904 = vmatpush1.bf16.xpose.msra.mxu0 0
        %905 = vmatprep.subr.bf16.mxu0 0
        %906 = vmatpush1.bf16.xpose.msra.mxu0 0
        %907 = vmatprep.subr.bf16.mxu0 0
        %908 = vmatpush1.bf16.xpose.msra.mxu0 0
        %909 = vmatprep.subr.bf16.mxu0 0
        %910 = vmatpush1.bf16.xpose.msra.mxu0 0
        %911 = vmatprep.subr.bf16.mxu0 0
        %912 = vmatpush1.bf16.xpose.msra.mxu0 0
        %913 = vmatprep.subr.bf16.mxu0 0
        %914 = vmatpush1.bf16.xpose.msra.mxu0 0
        %915 = vmatprep.subr.bf16.mxu0 0
        %916 = vmatpush1.bf16.xpose.msra.mxu0 0
        %917 = vmatprep.subr.bf16.mxu0 0
        %918 = vmatpush1.bf16.xpose.msra.mxu0 0
        %919 = vmatprep.subr.bf16.mxu0 0
        %920 = vmatpush1.bf16.xpose.msra.mxu0 0
        %921 = vmatprep.subr.bf16.mxu0 0
        %922 = vmatpush1.bf16.xpose.msra.mxu0 0
        %923 = vmatprep.subr.bf16.mxu0 0
        %924 = vmatpush1.bf16.xpose.msra.mxu0 0
        %925 = vmatprep.subr.bf16.mxu0 0
        %926 = vmatpush1.bf16.xpose.msra.mxu0 0
        %927 = vmatprep.subr.bf16.mxu0 0
        %928 = vmatpush1.bf16.xpose.msra.mxu0 0
        %929 = vmatprep.subr.bf16.mxu0 0
        %930 = vmatpush1.bf16.xpose.msra.mxu0 0
        %931 = vmatprep.mubr.bf16.mxu0 0
        %932 = vmatmul.mubr.bf16.gmra.mrb[0].mxu0 %v894
        %v933 = vpop.f32.mrb[0].mxu0
        %v934 = vadd.f32 0.0, %v933
        %v935 = vpop.f32.mrb[0].mxu0
        %v936 = vpop.f32.mrb[0].mxu0
        %v937 = vpop.f32.mrb[0].mxu0
        %938 = vdwg.mxu0
        %v940 = vcombine.high %v577, %v577
        %v942 = vunpack.c.l.s4 1966171168
        %v943 = vunpack.c.0.s8 %v942
        %v944 = vlaneseq
        %v945 = vshrl.u32 %v944, 7
        %v946 = vsub.s32 %v943, %v945
        %v947 = vrot.slane %v577, %v946
        %v949 = vunpack.c.l.s4 1966171168
        %v950 = vunpack.c.0.s8 %v949
        %v951 = vlaneseq
        %v952 = vshrl.u32 %v951, 7
        %v953 = vsub.s32 %v950, %v952
        %v954 = vrot.slane %v940, %v953
        %v955 = vcombine.high %v947, %v947
        %v956 = vcombine.high %v954, %v954
        %v958 = vunpack.c.l.s4 1966171168
        %v959 = vunpack.c.0.s8 %v958
        %v960 = vlaneseq
        %v961 = vshrl.u32 %v960, 7
        %v962 = vsub.s32 %v959, %v961
        %v963 = vrot.slane %v947, %v962
        %v965 = vunpack.c.l.s4 1966171168
        %v966 = vunpack.c.0.s8 %v965
        %v967 = vlaneseq
        %v968 = vshrl.u32 %v967, 7
        %v969 = vsub.s32 %v966, %v968
        %v970 = vrot.slane %v954, %v969
        %v972 = vunpack.c.l.s4 1966171168
        %v973 = vunpack.c.0.s8 %v972
        %v974 = vlaneseq
        %v975 = vshrl.u32 %v974, 7
        %v976 = vsub.s32 %v973, %v975
        %v977 = vrot.slane %v955, %v976
        %v979 = vunpack.c.l.s4 1966171168
        %v980 = vunpack.c.0.s8 %v979
        %v981 = vlaneseq
        %v982 = vshrl.u32 %v981, 7
        %v983 = vsub.s32 %v980, %v982
        %v984 = vrot.slane %v956, %v983
        %v985 = vcombine.high %v963, %v963
        %v986 = vcombine.high %v970, %v970
        %v987 = vcombine.high %v977, %v977
        %v988 = vcombine.high %v984, %v984
        %v989 = vlaneseq
        %v990 = vshrl.u32 %v989, 7
        %v991 = vsub.s32 0, %v990
        %v992 = vrot.slane %v963, %v991
        %v993 = vlaneseq
        %v994 = vshrl.u32 %v993, 7
        %v995 = vsub.s32 0, %v994
        %v996 = vrot.slane %v977, %v995
        %v997 = vlaneseq
        %v998 = vshrl.u32 %v997, 7
        %v999 = vsub.s32 0, %v998
        %v1000 = vrot.slane %v985, %v999
        %v1001 = vlaneseq
        %v1002 = vshrl.u32 %v1001, 7
        %v1003 = vsub.s32 0, %v1002
        %v1004 = vrot.slane %v987, %v1003
        %v1005 = vlaneseq
        %v1006 = vshrl.u32 %v1005, 7
        %v1007 = vsub.s32 0, %v1006
        %v1008 = vrot.slane %v970, %v1007
        %v1009 = vlaneseq
        %v1010 = vshrl.u32 %v1009, 7
        %v1011 = vsub.s32 0, %v1010
        %v1012 = vrot.slane %v984, %v1011
        %v1013 = vlaneseq
        %v1014 = vshrl.u32 %v1013, 7
        %v1015 = vsub.s32 0, %v1014
        %v1016 = vrot.slane %v986, %v1015
        %v1017 = vlaneseq
        %v1018 = vshrl.u32 %v1017, 7
        %v1019 = vsub.s32 0, %v1018
        %v1020 = vrot.slane %v988, %v1019
        %v1029 = vmul.f32 %v522, %v992
        %v1030 = vmul.f32 %v523, %v996
        %v1031 = vmul.f32 %v524, %v1000
        %v1032 = vmul.f32 %v525, %v1004
        %v1033 = vmul.f32 %v526, %v1008
        %v1034 = vmul.f32 %v527, %v1012
        %v1035 = vmul.f32 %v528, %v1016
        %v1036 = vmul.f32 %v529, %v1020
        %vm1037 = vcmask 130048
        %v1038 = vsel %vm1037, %v1029, 0.0
        %1039 = vadd.xlane.f32.xlu0 %v1038
        %v1040 = vpop.xlane.xlu0 %1039
        %v1041 = vsel %vm1037, %v1030, 0.0
        %1042 = vadd.xlane.f32.xlu0 %v1041
        %v1043 = vpop.xlane.xlu0 %1042
        %v1044 = vsel %vm1037, %v1031, 0.0
        %1045 = vadd.xlane.f32.xlu0 %v1044
        %v1046 = vpop.xlane.xlu0 %1045
        %v1047 = vsel %vm1037, %v1032, 0.0
        %1048 = vadd.xlane.f32.xlu0 %v1047
        %v1049 = vpop.xlane.xlu0 %1048
        %v1050 = vsel %vm1037, %v1033, 0.0
        %1051 = vadd.xlane.f32.xlu0 %v1050
        %v1052 = vpop.xlane.xlu0 %1051
        %v1053 = vsel %vm1037, %v1034, 0.0
        %1054 = vadd.xlane.f32.xlu0 %v1053
        %v1055 = vpop.xlane.xlu0 %1054
        %v1056 = vsel %vm1037, %v1035, 0.0
        %1057 = vadd.xlane.f32.xlu0 %v1056
        %v1058 = vpop.xlane.xlu0 %1057
        %v1059 = vsel %vm1037, %v1036, 0.0
        %1060 = vadd.xlane.f32.xlu0 %v1059
        %v1061 = vpop.xlane.xlu0 %1060
        %v1062 = vmul.f32 %v522, %v781
        %v1063 = vmul.f32 %v523, %v781
        %v1064 = vmul.f32 %v524, %v781
        %v1065 = vmul.f32 %v525, %v781
        %v1066 = vmul.f32 %v526, %v781
        %v1067 = vmul.f32 %v527, %v781
        %v1068 = vmul.f32 %v528, %v781
        %v1069 = vmul.f32 %v529, %v781
        %v1070 = vsel %vm1037, %v1062, 0.0
        %1071 = vadd.xlane.f32.xlu0 %v1070
        %v1072 = vpop.xlane.xlu0 %1071
        %v1073 = vsel %vm1037, %v1063, 0.0
        %1074 = vadd.xlane.f32.xlu0 %v1073
        %v1075 = vpop.xlane.xlu0 %1074
        %v1076 = vsel %vm1037, %v1064, 0.0
        %1077 = vadd.xlane.f32.xlu0 %v1076
        %v1078 = vpop.xlane.xlu0 %1077
        %v1079 = vsel %vm1037, %v1065, 0.0
        %1080 = vadd.xlane.f32.xlu0 %v1079
        %v1081 = vpop.xlane.xlu0 %1080
        %v1082 = vsel %vm1037, %v1066, 0.0
        %1083 = vadd.xlane.f32.xlu0 %v1082
        %v1084 = vpop.xlane.xlu0 %1083
        %v1085 = vsel %vm1037, %v1067, 0.0
        %1086 = vadd.xlane.f32.xlu0 %v1085
        %v1087 = vpop.xlane.xlu0 %1086
        %v1088 = vsel %vm1037, %v1068, 0.0
        %1089 = vadd.xlane.f32.xlu0 %v1088
        %v1090 = vpop.xlane.xlu0 %1089
        %v1091 = vsel %vm1037, %v1069, 0.0
        %1092 = vadd.xlane.f32.xlu0 %v1091
        %v1093 = vpop.xlane.xlu0 %1092
        %v1094 = vadd.f32 %v1040, %v1072
        %v1095 = vadd.f32 %v1043, %v1075
        %v1096 = vadd.f32 %v1046, %v1078
        %v1097 = vadd.f32 %v1049, %v1081
        %v1098 = vadd.f32 %v1052, %v1084
        %v1099 = vadd.f32 %v1055, %v1087
        %v1100 = vadd.f32 %v1058, %v1090
        %v1101 = vadd.f32 %v1061, %v1093
        %v1103 = vcombine.high %v628, %v628
        %v1105 = vunpack.c.l.s4 1966171168
        %v1106 = vunpack.c.0.s8 %v1105
        %v1107 = vlaneseq
        %v1108 = vshrl.u32 %v1107, 7
        %v1109 = vsub.s32 %v1106, %v1108
        %v1110 = vrot.slane %v628, %v1109
        %v1112 = vunpack.c.l.s4 1966171168
        %v1113 = vunpack.c.0.s8 %v1112
        %v1114 = vlaneseq
        %v1115 = vshrl.u32 %v1114, 7
        %v1116 = vsub.s32 %v1113, %v1115
        %v1117 = vrot.slane %v1103, %v1116
        %v1118 = vcombine.high %v1110, %v1110
        %v1119 = vcombine.high %v1117, %v1117
        %v1121 = vunpack.c.l.s4 1966171168
        %v1122 = vunpack.c.0.s8 %v1121
        %v1123 = vlaneseq
        %v1124 = vshrl.u32 %v1123, 7
        %v1125 = vsub.s32 %v1122, %v1124
        %v1126 = vrot.slane %v1110, %v1125
        %v1128 = vunpack.c.l.s4 1966171168
        %v1129 = vunpack.c.0.s8 %v1128
        %v1130 = vlaneseq
        %v1131 = vshrl.u32 %v1130, 7
        %v1132 = vsub.s32 %v1129, %v1131
        %v1133 = vrot.slane %v1117, %v1132
        %v1135 = vunpack.c.l.s4 1966171168
        %v1136 = vunpack.c.0.s8 %v1135
        %v1137 = vlaneseq
        %v1138 = vshrl.u32 %v1137, 7
        %v1139 = vsub.s32 %v1136, %v1138
        %v1140 = vrot.slane %v1118, %v1139
        %v1142 = vunpack.c.l.s4 1966171168
        %v1143 = vunpack.c.0.s8 %v1142
        %v1144 = vlaneseq
        %v1145 = vshrl.u32 %v1144, 7
        %v1146 = vsub.s32 %v1143, %v1145
        %v1147 = vrot.slane %v1119, %v1146
        %v1148 = vcombine.high %v1126, %v1126
        %v1149 = vcombine.high %v1133, %v1133
        %v1150 = vcombine.high %v1140, %v1140
        %v1151 = vcombine.high %v1147, %v1147
        %v1152 = vlaneseq
        %v1153 = vshrl.u32 %v1152, 7
        %v1154 = vsub.s32 0, %v1153
        %v1155 = vrot.slane %v1126, %v1154
        %v1156 = vlaneseq
        %v1157 = vshrl.u32 %v1156, 7
        %v1158 = vsub.s32 0, %v1157
        %v1159 = vrot.slane %v1140, %v1158
        %v1160 = vlaneseq
        %v1161 = vshrl.u32 %v1160, 7
        %v1162 = vsub.s32 0, %v1161
        %v1163 = vrot.slane %v1148, %v1162
        %v1164 = vlaneseq
        %v1165 = vshrl.u32 %v1164, 7
        %v1166 = vsub.s32 0, %v1165
        %v1167 = vrot.slane %v1150, %v1166
        %v1168 = vlaneseq
        %v1169 = vshrl.u32 %v1168, 7
        %v1170 = vsub.s32 0, %v1169
        %v1171 = vrot.slane %v1133, %v1170
        %v1172 = vlaneseq
        %v1173 = vshrl.u32 %v1172, 7
        %v1174 = vsub.s32 0, %v1173
        %v1175 = vrot.slane %v1147, %v1174
        %v1176 = vlaneseq
        %v1177 = vshrl.u32 %v1176, 7
        %v1178 = vsub.s32 0, %v1177
        %v1179 = vrot.slane %v1149, %v1178
        %v1180 = vlaneseq
        %v1181 = vshrl.u32 %v1180, 7
        %v1182 = vsub.s32 0, %v1181
        %v1183 = vrot.slane %v1151, %v1182
        %v1192 = vmul.f32 %v522, %v1155
        %v1193 = vmul.f32 %v523, %v1159
        %v1194 = vmul.f32 %v524, %v1163
        %v1195 = vmul.f32 %v525, %v1167
        %v1196 = vmul.f32 %v526, %v1171
        %v1197 = vmul.f32 %v527, %v1175
        %v1198 = vmul.f32 %v528, %v1179
        %v1199 = vmul.f32 %v529, %v1183
        %v1200 = vsel %vm1037, %v1192, 0.0
        %1201 = vadd.xlane.f32.xlu0 %v1200
        %v1202 = vpop.xlane.xlu0 %1201
        %v1203 = vsel %vm1037, %v1193, 0.0
        %1204 = vadd.xlane.f32.xlu0 %v1203
        %v1205 = vpop.xlane.xlu0 %1204
        %v1206 = vsel %vm1037, %v1194, 0.0
        %1207 = vadd.xlane.f32.xlu0 %v1206
        %v1208 = vpop.xlane.xlu0 %1207
        %v1209 = vsel %vm1037, %v1195, 0.0
        %1210 = vadd.xlane.f32.xlu0 %v1209
        %v1211 = vpop.xlane.xlu0 %1210
        %v1212 = vsel %vm1037, %v1196, 0.0
        %1213 = vadd.xlane.f32.xlu0 %v1212
        %v1214 = vpop.xlane.xlu0 %1213
        %v1215 = vsel %vm1037, %v1197, 0.0
        %1216 = vadd.xlane.f32.xlu0 %v1215
        %v1217 = vpop.xlane.xlu0 %1216
        %v1218 = vsel %vm1037, %v1198, 0.0
        %1219 = vadd.xlane.f32.xlu0 %v1218
        %v1220 = vpop.xlane.xlu0 %1219
        %v1221 = vsel %vm1037, %v1199, 0.0
        %1222 = vadd.xlane.f32.xlu0 %v1221
        %v1223 = vpop.xlane.xlu0 %1222
        %v1224 = vmul.f32 %v522, %v832
        %v1225 = vmul.f32 %v523, %v832
        %v1226 = vmul.f32 %v524, %v832
        %v1227 = vmul.f32 %v525, %v832
        %v1228 = vmul.f32 %v526, %v832
        %v1229 = vmul.f32 %v527, %v832
        %v1230 = vmul.f32 %v528, %v832
        %v1231 = vmul.f32 %v529, %v832
        %v1232 = vsel %vm1037, %v1224, 0.0
        %1233 = vadd.xlane.f32.xlu0 %v1232
        %v1234 = vpop.xlane.xlu0 %1233
        %v1235 = vsel %vm1037, %v1225, 0.0
        %1236 = vadd.xlane.f32.xlu0 %v1235
        %v1237 = vpop.xlane.xlu0 %1236
        %v1238 = vsel %vm1037, %v1226, 0.0
        %1239 = vadd.xlane.f32.xlu0 %v1238
        %v1240 = vpop.xlane.xlu0 %1239
        %v1241 = vsel %vm1037, %v1227, 0.0
        %1242 = vadd.xlane.f32.xlu0 %v1241
        %v1243 = vpop.xlane.xlu0 %1242
        %v1244 = vsel %vm1037, %v1228, 0.0
        %1245 = vadd.xlane.f32.xlu0 %v1244
        %v1246 = vpop.xlane.xlu0 %1245
        %v1247 = vsel %vm1037, %v1229, 0.0
        %1248 = vadd.xlane.f32.xlu0 %v1247
        %v1249 = vpop.xlane.xlu0 %1248
        %v1250 = vsel %vm1037, %v1230, 0.0
        %1251 = vadd.xlane.f32.xlu0 %v1250
        %v1252 = vpop.xlane.xlu0 %1251
        %v1253 = vsel %vm1037, %v1231, 0.0
        %1254 = vadd.xlane.f32.xlu0 %v1253
        %v1255 = vpop.xlane.xlu0 %1254
        %v1256 = vadd.f32 %v1202, %v1234
        %v1257 = vadd.f32 %v1205, %v1237
        %v1258 = vadd.f32 %v1208, %v1240
        %v1259 = vadd.f32 %v1211, %v1243
        %v1260 = vadd.f32 %v1214, %v1246
        %v1261 = vadd.f32 %v1217, %v1249
        %v1262 = vadd.f32 %v1220, %v1252
        %v1263 = vadd.f32 %v1223, %v1255
        %v1265 = vcombine.high %v679, %v679
        %v1267 = vunpack.c.l.s4 1966171168
        %v1268 = vunpack.c.0.s8 %v1267
        %v1269 = vlaneseq
        %v1270 = vshrl.u32 %v1269, 7
        %v1271 = vsub.s32 %v1268, %v1270
        %v1272 = vrot.slane %v679, %v1271
        %v1274 = vunpack.c.l.s4 1966171168
        %v1275 = vunpack.c.0.s8 %v1274
        %v1276 = vlaneseq
        %v1277 = vshrl.u32 %v1276, 7
        %v1278 = vsub.s32 %v1275, %v1277
        %v1279 = vrot.slane %v1265, %v1278
        %v1280 = vcombine.high %v1272, %v1272
        %v1281 = vcombine.high %v1279, %v1279
        %v1283 = vunpack.c.l.s4 1966171168
        %v1284 = vunpack.c.0.s8 %v1283
        %v1285 = vlaneseq
        %v1286 = vshrl.u32 %v1285, 7
        %v1287 = vsub.s32 %v1284, %v1286
        %v1288 = vrot.slane %v1272, %v1287
        %v1290 = vunpack.c.l.s4 1966171168
        %v1291 = vunpack.c.0.s8 %v1290
        %v1292 = vlaneseq
        %v1293 = vshrl.u32 %v1292, 7
        %v1294 = vsub.s32 %v1291, %v1293
        %v1295 = vrot.slane %v1279, %v1294
        %v1297 = vunpack.c.l.s4 1966171168
        %v1298 = vunpack.c.0.s8 %v1297
        %v1299 = vlaneseq
        %v1300 = vshrl.u32 %v1299, 7
        %v1301 = vsub.s32 %v1298, %v1300
        %v1302 = vrot.slane %v1280, %v1301
        %v1304 = vunpack.c.l.s4 1966171168
        %v1305 = vunpack.c.0.s8 %v1304
        %v1306 = vlaneseq
        %v1307 = vshrl.u32 %v1306, 7
        %v1308 = vsub.s32 %v1305, %v1307
        %v1309 = vrot.slane %v1281, %v1308
        %v1310 = vcombine.high %v1288, %v1288
        %v1311 = vcombine.high %v1295, %v1295
        %v1312 = vcombine.high %v1302, %v1302
        %v1313 = vcombine.high %v1309, %v1309
        %v1314 = vlaneseq
        %v1315 = vshrl.u32 %v1314, 7
        %v1316 = vsub.s32 0, %v1315
        %v1317 = vrot.slane %v1288, %v1316
        %v1318 = vlaneseq
        %v1319 = vshrl.u32 %v1318, 7
        %v1320 = vsub.s32 0, %v1319
        %v1321 = vrot.slane %v1302, %v1320
        %v1322 = vlaneseq
        %v1323 = vshrl.u32 %v1322, 7
        %v1324 = vsub.s32 0, %v1323
        %v1325 = vrot.slane %v1310, %v1324
        %v1326 = vlaneseq
        %v1327 = vshrl.u32 %v1326, 7
        %v1328 = vsub.s32 0, %v1327
        %v1329 = vrot.slane %v1312, %v1328
        %v1330 = vlaneseq
        %v1331 = vshrl.u32 %v1330, 7
        %v1332 = vsub.s32 0, %v1331
        %v1333 = vrot.slane %v1295, %v1332
        %v1334 = vlaneseq
        %v1335 = vshrl.u32 %v1334, 7
        %v1336 = vsub.s32 0, %v1335
        %v1337 = vrot.slane %v1309, %v1336
        %v1338 = vlaneseq
        %v1339 = vshrl.u32 %v1338, 7
        %v1340 = vsub.s32 0, %v1339
        %v1341 = vrot.slane %v1311, %v1340
        %v1342 = vlaneseq
        %v1343 = vshrl.u32 %v1342, 7
        %v1344 = vsub.s32 0, %v1343
        %v1345 = vrot.slane %v1313, %v1344
        %v1354 = vmul.f32 %v522, %v1317
        %v1355 = vmul.f32 %v523, %v1321
        %v1356 = vmul.f32 %v524, %v1325
        %v1357 = vmul.f32 %v525, %v1329
        %v1358 = vmul.f32 %v526, %v1333
        %v1359 = vmul.f32 %v527, %v1337
        %v1360 = vmul.f32 %v528, %v1341
        %v1361 = vmul.f32 %v529, %v1345
        %v1362 = vsel %vm1037, %v1354, 0.0
        %1363 = vadd.xlane.f32.xlu0 %v1362
        %v1364 = vpop.xlane.xlu0 %1363
        %v1365 = vsel %vm1037, %v1355, 0.0
        %1366 = vadd.xlane.f32.xlu0 %v1365
        %v1367 = vpop.xlane.xlu0 %1366
        %v1368 = vsel %vm1037, %v1356, 0.0
        %1369 = vadd.xlane.f32.xlu0 %v1368
        %v1370 = vpop.xlane.xlu0 %1369
        %v1371 = vsel %vm1037, %v1357, 0.0
        %1372 = vadd.xlane.f32.xlu0 %v1371
        %v1373 = vpop.xlane.xlu0 %1372
        %v1374 = vsel %vm1037, %v1358, 0.0
        %1375 = vadd.xlane.f32.xlu0 %v1374
        %v1376 = vpop.xlane.xlu0 %1375
        %v1377 = vsel %vm1037, %v1359, 0.0
        %1378 = vadd.xlane.f32.xlu0 %v1377
        %v1379 = vpop.xlane.xlu0 %1378
        %v1380 = vsel %vm1037, %v1360, 0.0
        %1381 = vadd.xlane.f32.xlu0 %v1380
        %v1382 = vpop.xlane.xlu0 %1381
        %v1383 = vsel %vm1037, %v1361, 0.0
        %1384 = vadd.xlane.f32.xlu0 %v1383
        %v1385 = vpop.xlane.xlu0 %1384
        %v1386 = vmul.f32 %v522, %v883
        %v1387 = vmul.f32 %v523, %v883
        %v1388 = vmul.f32 %v524, %v883
        %v1389 = vmul.f32 %v525, %v883
        %v1390 = vmul.f32 %v526, %v883
        %v1391 = vmul.f32 %v527, %v883
        %v1392 = vmul.f32 %v528, %v883
        %v1393 = vmul.f32 %v529, %v883
        %v1394 = vsel %vm1037, %v1386, 0.0
        %1395 = vadd.xlane.f32.xlu0 %v1394
        %v1396 = vpop.xlane.xlu0 %1395
        %v1397 = vsel %vm1037, %v1387, 0.0
        %1398 = vadd.xlane.f32.xlu0 %v1397
        %v1399 = vpop.xlane.xlu0 %1398
        %v1400 = vsel %vm1037, %v1388, 0.0
        %1401 = vadd.xlane.f32.xlu0 %v1400
        %v1402 = vpop.xlane.xlu0 %1401
        %v1403 = vsel %vm1037, %v1389, 0.0
        %1404 = vadd.xlane.f32.xlu0 %v1403
        %v1405 = vpop.xlane.xlu0 %1404
        %v1406 = vsel %vm1037, %v1390, 0.0
        %1407 = vadd.xlane.f32.xlu0 %v1406
        %v1408 = vpop.xlane.xlu0 %1407
        %v1409 = vsel %vm1037, %v1391, 0.0
        %1410 = vadd.xlane.f32.xlu0 %v1409
        %v1411 = vpop.xlane.xlu0 %1410
        %v1412 = vsel %vm1037, %v1392, 0.0
        %1413 = vadd.xlane.f32.xlu0 %v1412
        %v1414 = vpop.xlane.xlu0 %1413
        %v1415 = vsel %vm1037, %v1393, 0.0
        %1416 = vadd.xlane.f32.xlu0 %v1415
        %v1417 = vpop.xlane.xlu0 %1416
        %v1418 = vadd.f32 %v1364, %v1396
        %v1419 = vadd.f32 %v1367, %v1399
        %v1420 = vadd.f32 %v1370, %v1402
        %v1421 = vadd.f32 %v1373, %v1405
        %v1422 = vadd.f32 %v1376, %v1408
        %v1423 = vadd.f32 %v1379, %v1411
        %v1424 = vadd.f32 %v1382, %v1414
        %v1425 = vadd.f32 %v1385, %v1417
        %v1427 = vcombine.high %v730, %v730
        %v1429 = vunpack.c.l.s4 1966171168
        %v1430 = vunpack.c.0.s8 %v1429
        %v1431 = vlaneseq
        %v1432 = vshrl.u32 %v1431, 7
        %v1433 = vsub.s32 %v1430, %v1432
        %v1434 = vrot.slane %v730, %v1433
        %v1436 = vunpack.c.l.s4 1966171168
        %v1437 = vunpack.c.0.s8 %v1436
        %v1438 = vlaneseq
        %v1439 = vshrl.u32 %v1438, 7
        %v1440 = vsub.s32 %v1437, %v1439
        %v1441 = vrot.slane %v1427, %v1440
        %v1442 = vcombine.high %v1434, %v1434
        %v1443 = vcombine.high %v1441, %v1441
        %v1445 = vunpack.c.l.s4 1966171168
        %v1446 = vunpack.c.0.s8 %v1445
        %v1447 = vlaneseq
        %v1448 = vshrl.u32 %v1447, 7
        %v1449 = vsub.s32 %v1446, %v1448
        %v1450 = vrot.slane %v1434, %v1449
        %v1452 = vunpack.c.l.s4 1966171168
        %v1453 = vunpack.c.0.s8 %v1452
        %v1454 = vlaneseq
        %v1455 = vshrl.u32 %v1454, 7
        %v1456 = vsub.s32 %v1453, %v1455
        %v1457 = vrot.slane %v1441, %v1456
        %v1459 = vunpack.c.l.s4 1966171168
        %v1460 = vunpack.c.0.s8 %v1459
        %v1461 = vlaneseq
        %v1462 = vshrl.u32 %v1461, 7
        %v1463 = vsub.s32 %v1460, %v1462
        %v1464 = vrot.slane %v1442, %v1463
        %v1466 = vunpack.c.l.s4 1966171168
        %v1467 = vunpack.c.0.s8 %v1466
        %v1468 = vlaneseq
        %v1469 = vshrl.u32 %v1468, 7
        %v1470 = vsub.s32 %v1467, %v1469
        %v1471 = vrot.slane %v1443, %v1470
        %v1472 = vcombine.high %v1450, %v1450
        %v1473 = vcombine.high %v1457, %v1457
        %v1474 = vcombine.high %v1464, %v1464
        %v1475 = vcombine.high %v1471, %v1471
        %v1476 = vlaneseq
        %v1477 = vshrl.u32 %v1476, 7
        %v1478 = vsub.s32 0, %v1477
        %v1479 = vrot.slane %v1450, %v1478
        %v1480 = vlaneseq
        %v1481 = vshrl.u32 %v1480, 7
        %v1482 = vsub.s32 0, %v1481
        %v1483 = vrot.slane %v1464, %v1482
        %v1484 = vlaneseq
        %v1485 = vshrl.u32 %v1484, 7
        %v1486 = vsub.s32 0, %v1485
        %v1487 = vrot.slane %v1472, %v1486
        %v1488 = vlaneseq
        %v1489 = vshrl.u32 %v1488, 7
        %v1490 = vsub.s32 0, %v1489
        %v1491 = vrot.slane %v1474, %v1490
        %v1492 = vlaneseq
        %v1493 = vshrl.u32 %v1492, 7
        %v1494 = vsub.s32 0, %v1493
        %v1495 = vrot.slane %v1457, %v1494
        %v1496 = vlaneseq
        %v1497 = vshrl.u32 %v1496, 7
        %v1498 = vsub.s32 0, %v1497
        %v1499 = vrot.slane %v1471, %v1498
        %v1500 = vlaneseq
        %v1501 = vshrl.u32 %v1500, 7
        %v1502 = vsub.s32 0, %v1501
        %v1503 = vrot.slane %v1473, %v1502
        %v1504 = vlaneseq
        %v1505 = vshrl.u32 %v1504, 7
        %v1506 = vsub.s32 0, %v1505
        %v1507 = vrot.slane %v1475, %v1506
        %v1516 = vmul.f32 %v522, %v1479
        %v1517 = vmul.f32 %v523, %v1483
        %v1518 = vmul.f32 %v524, %v1487
        %v1519 = vmul.f32 %v525, %v1491
        %v1520 = vmul.f32 %v526, %v1495
        %v1521 = vmul.f32 %v527, %v1499
        %v1522 = vmul.f32 %v528, %v1503
        %v1523 = vmul.f32 %v529, %v1507
        %v1524 = vsel %vm1037, %v1516, 0.0
        %1525 = vadd.xlane.f32.xlu0 %v1524
        %v1526 = vpop.xlane.xlu0 %1525
        %v1527 = vsel %vm1037, %v1517, 0.0
        %1528 = vadd.xlane.f32.xlu0 %v1527
        %v1529 = vpop.xlane.xlu0 %1528
        %v1530 = vsel %vm1037, %v1518, 0.0
        %1531 = vadd.xlane.f32.xlu0 %v1530
        %v1532 = vpop.xlane.xlu0 %1531
        %v1533 = vsel %vm1037, %v1519, 0.0
        %1534 = vadd.xlane.f32.xlu0 %v1533
        %v1535 = vpop.xlane.xlu0 %1534
        %v1536 = vsel %vm1037, %v1520, 0.0
        %1537 = vadd.xlane.f32.xlu0 %v1536
        %v1538 = vpop.xlane.xlu0 %1537
        %v1539 = vsel %vm1037, %v1521, 0.0
        %1540 = vadd.xlane.f32.xlu0 %v1539
        %v1541 = vpop.xlane.xlu0 %1540
        %v1542 = vsel %vm1037, %v1522, 0.0
        %1543 = vadd.xlane.f32.xlu0 %v1542
        %v1544 = vpop.xlane.xlu0 %1543
        %v1545 = vsel %vm1037, %v1523, 0.0
        %1546 = vadd.xlane.f32.xlu0 %v1545
        %v1547 = vpop.xlane.xlu0 %1546
        %v1548 = vmul.f32 %v522, %v934
        %v1549 = vmul.f32 %v523, %v934
        %v1550 = vmul.f32 %v524, %v934
        %v1551 = vmul.f32 %v525, %v934
        %v1552 = vmul.f32 %v526, %v934
        %v1553 = vmul.f32 %v527, %v934
        %v1554 = vmul.f32 %v528, %v934
        %v1555 = vmul.f32 %v529, %v934
        %v1556 = vsel %vm1037, %v1548, 0.0
        %1557 = vadd.xlane.f32.xlu0 %v1556
        %v1558 = vpop.xlane.xlu0 %1557
        %v1559 = vsel %vm1037, %v1549, 0.0
        %1560 = vadd.xlane.f32.xlu0 %v1559
        %v1561 = vpop.xlane.xlu0 %1560
        %v1562 = vsel %vm1037, %v1550, 0.0
        %1563 = vadd.xlane.f32.xlu0 %v1562
        %v1564 = vpop.xlane.xlu0 %1563
        %v1565 = vsel %vm1037, %v1551, 0.0
        %1566 = vadd.xlane.f32.xlu0 %v1565
        %v1567 = vpop.xlane.xlu0 %1566
        %v1568 = vsel %vm1037, %v1552, 0.0
        %1569 = vadd.xlane.f32.xlu0 %v1568
        %v1570 = vpop.xlane.xlu0 %1569
        %v1571 = vsel %vm1037, %v1553, 0.0
        %1572 = vadd.xlane.f32.xlu0 %v1571
        %v1573 = vpop.xlane.xlu0 %1572
        %v1574 = vsel %vm1037, %v1554, 0.0
        %1575 = vadd.xlane.f32.xlu0 %v1574
        %v1576 = vpop.xlane.xlu0 %1575
        %v1577 = vsel %vm1037, %v1555, 0.0
        %1578 = vadd.xlane.f32.xlu0 %v1577
        %v1579 = vpop.xlane.xlu0 %1578
        %v1580 = vadd.f32 %v1526, %v1558
        %v1581 = vadd.f32 %v1529, %v1561
        %v1582 = vadd.f32 %v1532, %v1564
        %v1583 = vadd.f32 %v1535, %v1567
        %v1584 = vadd.f32 %v1538, %v1570
        %v1585 = vadd.f32 %v1541, %v1573
        %v1586 = vadd.f32 %v1544, %v1576
        %v1587 = vadd.f32 %v1547, %v1579
        %1596 = vset.pattern.permute.xlu0 0
        %1597 = vperm.xlu0 %1596, %v1094
        %v1598 = vpop.permute.xlu0 %1597
        %1599 = vset.pattern.permute.xlu0 0
        %1600 = vperm.xlu0 %1599, %v1095
        %v1601 = vpop.permute.xlu0 %1600
        %1602 = vset.pattern.permute.xlu0 0
        %1603 = vperm.xlu0 %1602, %v1096
        %v1604 = vpop.permute.xlu0 %1603
        %1605 = vset.pattern.permute.xlu0 0
        %1606 = vperm.xlu0 %1605, %v1097
        %v1607 = vpop.permute.xlu0 %1606
        %1608 = vset.pattern.permute.xlu0 0
        %1609 = vperm.xlu0 %1608, %v1098
        %v1610 = vpop.permute.xlu0 %1609
        %1611 = vset.pattern.permute.xlu0 0
        %1612 = vperm.xlu0 %1611, %v1099
        %v1613 = vpop.permute.xlu0 %1612
        %1614 = vset.pattern.permute.xlu0 0
        %1615 = vperm.xlu0 %1614, %v1100
        %v1616 = vpop.permute.xlu0 %1615
        %1617 = vset.pattern.permute.xlu0 0
        %1618 = vperm.xlu0 %1617, %v1101
        %v1619 = vpop.permute.xlu0 %1618
        %v1620 = vlaneseq
        %v1621 = vand.u32 %v1620, 127
        %v1622 = vlaneseq
        %v1623 = vshrl.u32 %v1622, 7
        %v1624 = vsub.s32 %v1621, %v1623
        %v1625 = vrot.slane %v1598, %v1624
        %v1626 = vlaneseq
        %v1627 = vshrl.u32 %v1626, 7
        %v1628 = vsub.s32 %v1621, %v1627
        %v1629 = vrot.slane %v1601, %v1628
        %v1630 = vlaneseq
        %v1631 = vshrl.u32 %v1630, 7
        %v1632 = vsub.s32 %v1621, %v1631
        %v1633 = vrot.slane %v1604, %v1632
        %v1634 = vlaneseq
        %v1635 = vshrl.u32 %v1634, 7
        %v1636 = vsub.s32 %v1621, %v1635
        %v1637 = vrot.slane %v1607, %v1636
        %v1638 = vlaneseq
        %v1639 = vshrl.u32 %v1638, 7
        %v1640 = vsub.s32 %v1621, %v1639
        %v1641 = vrot.slane %v1610, %v1640
        %v1642 = vlaneseq
        %v1643 = vshrl.u32 %v1642, 7
        %v1644 = vsub.s32 %v1621, %v1643
        %v1645 = vrot.slane %v1613, %v1644
        %v1646 = vlaneseq
        %v1647 = vshrl.u32 %v1646, 7
        %v1648 = vsub.s32 %v1621, %v1647
        %v1649 = vrot.slane %v1616, %v1648
        %v1650 = vlaneseq
        %v1651 = vshrl.u32 %v1650, 7
        %v1652 = vsub.s32 %v1621, %v1651
        %v1653 = vrot.slane %v1619, %v1652
        %vm1654 = vcmask 1041409
        %v1655 = vsel %vm1654, %v1629, %v1625
        %vm1656 = vcmask 1042434
        %v1657 = vsel %vm1656, %v1633, %v1655
        %vm1658 = vcmask 1043459
        %v1659 = vsel %vm1658, %v1637, %v1657
        %vm1660 = vcmask 1044484
        %v1661 = vsel %vm1660, %v1641, %v1659
        %vm1662 = vcmask 1045509
        %v1663 = vsel %vm1662, %v1645, %v1661
        %vm1664 = vcmask 1046534
        %v1665 = vsel %vm1664, %v1649, %v1663
        %vm1666 = vcmask 1047559
        %v1667 = vsel %vm1666, %v1653, %v1665
        %1669 = vmatprep.subr.bf16.mxu0 0
        %1670 = vmatpush1.bf16.xpose.msra.mxu0 %v741
        %1671 = vmatprep.subr.bf16.mxu0 0
        %1672 = vmatpush1.bf16.xpose.msra.mxu0 0
        %1673 = vmatprep.subr.bf16.mxu0 0
        %1674 = vmatpush1.bf16.xpose.msra.mxu0 0
        %1675 = vmatprep.subr.bf16.mxu0 0
        %1676 = vmatpush1.bf16.xpose.msra.mxu0 0
        %1677 = vmatprep.subr.bf16.mxu0 0
        %1678 = vmatpush1.bf16.xpose.msra.mxu0 0
        %1679 = vmatprep.subr.bf16.mxu0 0
        %1680 = vmatpush1.bf16.xpose.msra.mxu0 0
        %1681 = vmatprep.subr.bf16.mxu0 0
        %1682 = vmatpush1.bf16.xpose.msra.mxu0 0
        %1683 = vmatprep.subr.bf16.mxu0 0
        %1684 = vmatpush1.bf16.xpose.msra.mxu0 0
        %1685 = vmatprep.subr.bf16.mxu0 0
        %1686 = vmatpush1.bf16.xpose.msra.mxu0 0
        %1687 = vmatprep.subr.bf16.mxu0 0
        %1688 = vmatpush1.bf16.xpose.msra.mxu0 0
        %1689 = vmatprep.subr.bf16.mxu0 0
        %1690 = vmatpush1.bf16.xpose.msra.mxu0 0
        %1691 = vmatprep.subr.bf16.mxu0 0
        %1692 = vmatpush1.bf16.xpose.msra.mxu0 0
        %1693 = vmatprep.subr.bf16.mxu0 0
        %1694 = vmatpush1.bf16.xpose.msra.mxu0 0
        %1695 = vmatprep.subr.bf16.mxu0 0
        %1696 = vmatpush1.bf16.xpose.msra.mxu0 0
        %1697 = vmatprep.subr.bf16.mxu0 0
        %1698 = vmatpush1.bf16.xpose.msra.mxu0 0
        %1699 = vmatprep.subr.bf16.mxu0 0
        %1700 = vmatpush1.bf16.xpose.msra.mxu0 0
        %1701 = vmatprep.mubr.bf16.mxu0 0
        %1702 = vmatmul.mubr.bf16.gmra.mrb[0].mxu0 %v537
        %v1703 = vpop.f32.mrb[0].mxu0
        %v1704 = vadd.f32 %v1667, %v1703
        %v1705 = vpop.f32.mrb[0].mxu0
        %v1706 = vpop.f32.mrb[0].mxu0
        %v1707 = vpop.f32.mrb[0].mxu0
        %1708 = vdwg.mxu0
        %1717 = vset.pattern.permute.xlu0 0
        %1718 = vperm.xlu0 %1717, %v1256
        %v1719 = vpop.permute.xlu0 %1718
        %1720 = vset.pattern.permute.xlu0 0
        %1721 = vperm.xlu0 %1720, %v1257
        %v1722 = vpop.permute.xlu0 %1721
        %1723 = vset.pattern.permute.xlu0 0
        %1724 = vperm.xlu0 %1723, %v1258
        %v1725 = vpop.permute.xlu0 %1724
        %1726 = vset.pattern.permute.xlu0 0
        %1727 = vperm.xlu0 %1726, %v1259
        %v1728 = vpop.permute.xlu0 %1727
        %1729 = vset.pattern.permute.xlu0 0
        %1730 = vperm.xlu0 %1729, %v1260
        %v1731 = vpop.permute.xlu0 %1730
        %1732 = vset.pattern.permute.xlu0 0
        %1733 = vperm.xlu0 %1732, %v1261
        %v1734 = vpop.permute.xlu0 %1733
        %1735 = vset.pattern.permute.xlu0 0
        %1736 = vperm.xlu0 %1735, %v1262
        %v1737 = vpop.permute.xlu0 %1736
        %1738 = vset.pattern.permute.xlu0 0
        %1739 = vperm.xlu0 %1738, %v1263
        %v1740 = vpop.permute.xlu0 %1739
        %v1741 = vlaneseq
        %v1742 = vshrl.u32 %v1741, 7
        %v1743 = vsub.s32 %v1621, %v1742
        %v1744 = vrot.slane %v1719, %v1743
        %v1745 = vlaneseq
        %v1746 = vshrl.u32 %v1745, 7
        %v1747 = vsub.s32 %v1621, %v1746
        %v1748 = vrot.slane %v1722, %v1747
        %v1749 = vlaneseq
        %v1750 = vshrl.u32 %v1749, 7
        %v1751 = vsub.s32 %v1621, %v1750
        %v1752 = vrot.slane %v1725, %v1751
        %v1753 = vlaneseq
        %v1754 = vshrl.u32 %v1753, 7
        %v1755 = vsub.s32 %v1621, %v1754
        %v1756 = vrot.slane %v1728, %v1755
        %v1757 = vlaneseq
        %v1758 = vshrl.u32 %v1757, 7
        %v1759 = vsub.s32 %v1621, %v1758
        %v1760 = vrot.slane %v1731, %v1759
        %v1761 = vlaneseq
        %v1762 = vshrl.u32 %v1761, 7
        %v1763 = vsub.s32 %v1621, %v1762
        %v1764 = vrot.slane %v1734, %v1763
        %v1765 = vlaneseq
        %v1766 = vshrl.u32 %v1765, 7
        %v1767 = vsub.s32 %v1621, %v1766
        %v1768 = vrot.slane %v1737, %v1767
        %v1769 = vlaneseq
        %v1770 = vshrl.u32 %v1769, 7
        %v1771 = vsub.s32 %v1621, %v1770
        %v1772 = vrot.slane %v1740, %v1771
        %v1773 = vsel %vm1654, %v1748, %v1744
        %v1774 = vsel %vm1656, %v1752, %v1773
        %v1775 = vsel %vm1658, %v1756, %v1774
        %v1776 = vsel %vm1660, %v1760, %v1775
        %v1777 = vsel %vm1662, %v1764, %v1776
        %v1778 = vsel %vm1664, %v1768, %v1777
        %v1779 = vsel %vm1666, %v1772, %v1778
        %1781 = vmatprep.subr.bf16.mxu0 0
        %1782 = vmatpush1.bf16.xpose.msra.mxu0 %v792
        %1783 = vmatprep.subr.bf16.mxu0 0
        %1784 = vmatpush1.bf16.xpose.msra.mxu0 0
        %1785 = vmatprep.subr.bf16.mxu0 0
        %1786 = vmatpush1.bf16.xpose.msra.mxu0 0
        %1787 = vmatprep.subr.bf16.mxu0 0
        %1788 = vmatpush1.bf16.xpose.msra.mxu0 0
        %1789 = vmatprep.subr.bf16.mxu0 0
        %1790 = vmatpush1.bf16.xpose.msra.mxu0 0
        %1791 = vmatprep.subr.bf16.mxu0 0
        %1792 = vmatpush1.bf16.xpose.msra.mxu0 0
        %1793 = vmatprep.subr.bf16.mxu0 0
        %1794 = vmatpush1.bf16.xpose.msra.mxu0 0
        %1795 = vmatprep.subr.bf16.mxu0 0
        %1796 = vmatpush1.bf16.xpose.msra.mxu0 0
        %1797 = vmatprep.subr.bf16.mxu0 0
        %1798 = vmatpush1.bf16.xpose.msra.mxu0 0
        %1799 = vmatprep.subr.bf16.mxu0 0
        %1800 = vmatpush1.bf16.xpose.msra.mxu0 0
        %1801 = vmatprep.subr.bf16.mxu0 0
        %1802 = vmatpush1.bf16.xpose.msra.mxu0 0
        %1803 = vmatprep.subr.bf16.mxu0 0
        %1804 = vmatpush1.bf16.xpose.msra.mxu0 0
        %1805 = vmatprep.subr.bf16.mxu0 0
        %1806 = vmatpush1.bf16.xpose.msra.mxu0 0
        %1807 = vmatprep.subr.bf16.mxu0 0
        %1808 = vmatpush1.bf16.xpose.msra.mxu0 0
        %1809 = vmatprep.subr.bf16.mxu0 0
        %1810 = vmatpush1.bf16.xpose.msra.mxu0 0
        %1811 = vmatprep.subr.bf16.mxu0 0
        %1812 = vmatpush1.bf16.xpose.msra.mxu0 0
        %1813 = vmatprep.mubr.bf16.mxu0 0
        %1814 = vmatmul.mubr.bf16.gmra.mrb[0].mxu0 %v588
        %v1815 = vpop.f32.mrb[0].mxu0
        %v1816 = vadd.f32 %v1779, %v1815
        %v1817 = vpop.f32.mrb[0].mxu0
        %v1818 = vpop.f32.mrb[0].mxu0
        %v1819 = vpop.f32.mrb[0].mxu0
        %1820 = vdwg.mxu0
        %1829 = vset.pattern.permute.xlu0 0
        %1830 = vperm.xlu0 %1829, %v1418
        %v1831 = vpop.permute.xlu0 %1830
        %1832 = vset.pattern.permute.xlu0 0
        %1833 = vperm.xlu0 %1832, %v1419
        %v1834 = vpop.permute.xlu0 %1833
        %1835 = vset.pattern.permute.xlu0 0
        %1836 = vperm.xlu0 %1835, %v1420
        %v1837 = vpop.permute.xlu0 %1836
        %1838 = vset.pattern.permute.xlu0 0
        %1839 = vperm.xlu0 %1838, %v1421
        %v1840 = vpop.permute.xlu0 %1839
        %1841 = vset.pattern.permute.xlu0 0
        %1842 = vperm.xlu0 %1841, %v1422
        %v1843 = vpop.permute.xlu0 %1842
        %1844 = vset.pattern.permute.xlu0 0
        %1845 = vperm.xlu0 %1844, %v1423
        %v1846 = vpop.permute.xlu0 %1845
        %1847 = vset.pattern.permute.xlu0 0
        %1848 = vperm.xlu0 %1847, %v1424
        %v1849 = vpop.permute.xlu0 %1848
        %1850 = vset.pattern.permute.xlu0 0
        %1851 = vperm.xlu0 %1850, %v1425
        %v1852 = vpop.permute.xlu0 %1851
        %v1853 = vlaneseq
        %v1854 = vshrl.u32 %v1853, 7
        %v1855 = vsub.s32 %v1621, %v1854
        %v1856 = vrot.slane %v1831, %v1855
        %v1857 = vlaneseq
        %v1858 = vshrl.u32 %v1857, 7
        %v1859 = vsub.s32 %v1621, %v1858
        %v1860 = vrot.slane %v1834, %v1859
        %v1861 = vlaneseq
        %v1862 = vshrl.u32 %v1861, 7
        %v1863 = vsub.s32 %v1621, %v1862
        %v1864 = vrot.slane %v1837, %v1863
        %v1865 = vlaneseq
        %v1866 = vshrl.u32 %v1865, 7
        %v1867 = vsub.s32 %v1621, %v1866
        %v1868 = vrot.slane %v1840, %v1867
        %v1869 = vlaneseq
        %v1870 = vshrl.u32 %v1869, 7
        %v1871 = vsub.s32 %v1621, %v1870
        %v1872 = vrot.slane %v1843, %v1871
        %v1873 = vlaneseq
        %v1874 = vshrl.u32 %v1873, 7
        %v1875 = vsub.s32 %v1621, %v1874
        %v1876 = vrot.slane %v1846, %v1875
        %v1877 = vlaneseq
        %v1878 = vshrl.u32 %v1877, 7
        %v1879 = vsub.s32 %v1621, %v1878
        %v1880 = vrot.slane %v1849, %v1879
        %v1881 = vlaneseq
        %v1882 = vshrl.u32 %v1881, 7
        %v1883 = vsub.s32 %v1621, %v1882
        %v1884 = vrot.slane %v1852, %v1883
        %v1885 = vsel %vm1654, %v1860, %v1856
        %v1886 = vsel %vm1656, %v1864, %v1885
        %v1887 = vsel %vm1658, %v1868, %v1886
        %v1888 = vsel %vm1660, %v1872, %v1887
        %v1889 = vsel %vm1662, %v1876, %v1888
        %v1890 = vsel %vm1664, %v1880, %v1889
        %v1891 = vsel %vm1666, %v1884, %v1890
        %1893 = vmatprep.subr.bf16.mxu0 0
        %1894 = vmatpush1.bf16.xpose.msra.mxu0 %v843
        %1895 = vmatprep.subr.bf16.mxu0 0
        %1896 = vmatpush1.bf16.xpose.msra.mxu0 0
        %1897 = vmatprep.subr.bf16.mxu0 0
        %1898 = vmatpush1.bf16.xpose.msra.mxu0 0
        %1899 = vmatprep.subr.bf16.mxu0 0
        %1900 = vmatpush1.bf16.xpose.msra.mxu0 0
        %1901 = vmatprep.subr.bf16.mxu0 0
        %1902 = vmatpush1.bf16.xpose.msra.mxu0 0
        %1903 = vmatprep.subr.bf16.mxu0 0
        %1904 = vmatpush1.bf16.xpose.msra.mxu0 0
        %1905 = vmatprep.subr.bf16.mxu0 0
        %1906 = vmatpush1.bf16.xpose.msra.mxu0 0
        %1907 = vmatprep.subr.bf16.mxu0 0
        %1908 = vmatpush1.bf16.xpose.msra.mxu0 0
        %1909 = vmatprep.subr.bf16.mxu0 0
        %1910 = vmatpush1.bf16.xpose.msra.mxu0 0
        %1911 = vmatprep.subr.bf16.mxu0 0
        %1912 = vmatpush1.bf16.xpose.msra.mxu0 0
        %1913 = vmatprep.subr.bf16.mxu0 0
        %1914 = vmatpush1.bf16.xpose.msra.mxu0 0
        %1915 = vmatprep.subr.bf16.mxu0 0
        %1916 = vmatpush1.bf16.xpose.msra.mxu0 0
        %1917 = vmatprep.subr.bf16.mxu0 0
        %1918 = vmatpush1.bf16.xpose.msra.mxu0 0
        %1919 = vmatprep.subr.bf16.mxu0 0
        %1920 = vmatpush1.bf16.xpose.msra.mxu0 0
        %1921 = vmatprep.subr.bf16.mxu0 0
        %1922 = vmatpush1.bf16.xpose.msra.mxu0 0
        %1923 = vmatprep.subr.bf16.mxu0 0
        %1924 = vmatpush1.bf16.xpose.msra.mxu0 0
        %1925 = vmatprep.mubr.bf16.mxu0 0
        %1926 = vmatmul.mubr.bf16.gmra.mrb[0].mxu0 %v639
        %v1927 = vpop.f32.mrb[0].mxu0
        %v1928 = vadd.f32 %v1891, %v1927
        %v1929 = vpop.f32.mrb[0].mxu0
        %v1930 = vpop.f32.mrb[0].mxu0
        %v1931 = vpop.f32.mrb[0].mxu0
        %1932 = vdwg.mxu0
        %1941 = vset.pattern.permute.xlu0 0
        %1942 = vperm.xlu0 %1941, %v1580
        %v1943 = vpop.permute.xlu0 %1942
        %1944 = vset.pattern.permute.xlu0 0
        %1945 = vperm.xlu0 %1944, %v1581
        %v1946 = vpop.permute.xlu0 %1945
        %1947 = vset.pattern.permute.xlu0 0
        %1948 = vperm.xlu0 %1947, %v1582
        %v1949 = vpop.permute.xlu0 %1948
        %1950 = vset.pattern.permute.xlu0 0
        %1951 = vperm.xlu0 %1950, %v1583
        %v1952 = vpop.permute.xlu0 %1951
        %1953 = vset.pattern.permute.xlu0 0
        %1954 = vperm.xlu0 %1953, %v1584
        %v1955 = vpop.permute.xlu0 %1954
        %1956 = vset.pattern.permute.xlu0 0
        %1957 = vperm.xlu0 %1956, %v1585
        %v1958 = vpop.permute.xlu0 %1957
        %1959 = vset.pattern.permute.xlu0 0
        %1960 = vperm.xlu0 %1959, %v1586
        %v1961 = vpop.permute.xlu0 %1960
        %1962 = vset.pattern.permute.xlu0 0
        %1963 = vperm.xlu0 %1962, %v1587
        %v1964 = vpop.permute.xlu0 %1963
        %v1965 = vlaneseq
        %v1966 = vshrl.u32 %v1965, 7
        %v1967 = vsub.s32 %v1621, %v1966
        %v1968 = vrot.slane %v1943, %v1967
        %v1969 = vlaneseq
        %v1970 = vshrl.u32 %v1969, 7
        %v1971 = vsub.s32 %v1621, %v1970
        %v1972 = vrot.slane %v1946, %v1971
        %v1973 = vlaneseq
        %v1974 = vshrl.u32 %v1973, 7
        %v1975 = vsub.s32 %v1621, %v1974
        %v1976 = vrot.slane %v1949, %v1975
        %v1977 = vlaneseq
        %v1978 = vshrl.u32 %v1977, 7
        %v1979 = vsub.s32 %v1621, %v1978
        %v1980 = vrot.slane %v1952, %v1979
        %v1981 = vlaneseq
        %v1982 = vshrl.u32 %v1981, 7
        %v1983 = vsub.s32 %v1621, %v1982
        %v1984 = vrot.slane %v1955, %v1983
        %v1985 = vlaneseq
        %v1986 = vshrl.u32 %v1985, 7
        %v1987 = vsub.s32 %v1621, %v1986
        %v1988 = vrot.slane %v1958, %v1987
        %v1989 = vlaneseq
        %v1990 = vshrl.u32 %v1989, 7
        %v1991 = vsub.s32 %v1621, %v1990
        %v1992 = vrot.slane %v1961, %v1991
        %v1993 = vlaneseq
        %v1994 = vshrl.u32 %v1993, 7
        %v1995 = vsub.s32 %v1621, %v1994
        %v1996 = vrot.slane %v1964, %v1995
        %v1997 = vsel %vm1654, %v1972, %v1968
        %v1998 = vsel %vm1656, %v1976, %v1997
        %v1999 = vsel %vm1658, %v1980, %v1998
        %v2000 = vsel %vm1660, %v1984, %v1999
        %v2001 = vsel %vm1662, %v1988, %v2000
        %v2002 = vsel %vm1664, %v1992, %v2001
        %v2003 = vsel %vm1666, %v1996, %v2002
        %2005 = vmatprep.subr.bf16.mxu0 0
        %2006 = vmatpush1.bf16.xpose.msra.mxu0 %v894
        %2007 = vmatprep.subr.bf16.mxu0 0
        %2008 = vmatpush1.bf16.xpose.msra.mxu0 0
        %2009 = vmatprep.subr.bf16.mxu0 0
        %2010 = vmatpush1.bf16.xpose.msra.mxu0 0
        %2011 = vmatprep.subr.bf16.mxu0 0
        %2012 = vmatpush1.bf16.xpose.msra.mxu0 0
        %2013 = vmatprep.subr.bf16.mxu0 0
        %2014 = vmatpush1.bf16.xpose.msra.mxu0 0
        %2015 = vmatprep.subr.bf16.mxu0 0
        %2016 = vmatpush1.bf16.xpose.msra.mxu0 0
        %2017 = vmatprep.subr.bf16.mxu0 0
        %2018 = vmatpush1.bf16.xpose.msra.mxu0 0
        %2019 = vmatprep.subr.bf16.mxu0 0
        %2020 = vmatpush1.bf16.xpose.msra.mxu0 0
        %2021 = vmatprep.subr.bf16.mxu0 0
        %2022 = vmatpush1.bf16.xpose.msra.mxu0 0
        %2023 = vmatprep.subr.bf16.mxu0 0
        %2024 = vmatpush1.bf16.xpose.msra.mxu0 0
        %2025 = vmatprep.subr.bf16.mxu0 0
        %2026 = vmatpush1.bf16.xpose.msra.mxu0 0
        %2027 = vmatprep.subr.bf16.mxu0 0
        %2028 = vmatpush1.bf16.xpose.msra.mxu0 0
        %2029 = vmatprep.subr.bf16.mxu0 0
        %2030 = vmatpush1.bf16.xpose.msra.mxu0 0
        %2031 = vmatprep.subr.bf16.mxu0 0
        %2032 = vmatpush1.bf16.xpose.msra.mxu0 0
        %2033 = vmatprep.subr.bf16.mxu0 0
        %2034 = vmatpush1.bf16.xpose.msra.mxu0 0
        %2035 = vmatprep.subr.bf16.mxu0 0
        %2036 = vmatpush1.bf16.xpose.msra.mxu0 0
        %2037 = vmatprep.mubr.bf16.mxu0 0
        %2038 = vmatmul.mubr.bf16.gmra.mrb[0].mxu0 %v690
        %v2039 = vpop.f32.mrb[0].mxu0
        %v2040 = vadd.f32 %v2003, %v2039
        %v2041 = vpop.f32.mrb[0].mxu0
        %v2042 = vpop.f32.mrb[0].mxu0
        %v2043 = vpop.f32.mrb[0].mxu0
        %2044 = vdwg.mxu0
        %v2045 = vsel %vm513, 1, 0
        %vm2046 = vcmp.eq.s32.totalorder %v2045, 1
        %v2047 = vsel %vm2046, %v1704, -3.4028235e+38
        %v2048 = vsel %vm2046, %v1816, -3.4028235e+38
        %v2049 = vsel %vm2046, %v1928, -3.4028235e+38
        %v2050 = vsel %vm2046, %v2040, -3.4028235e+38
        %v2051 = vsel %vm535, %v2047, -inf
        %2052 = vmax.xlane.f32.xlu0 %v2051
        %v2053 = vpop.xlane.xlu0 %2052
        %v2054 = vsel %vm535, %v2048, -inf
        %2055 = vmax.xlane.f32.xlu0 %v2054
        %v2056 = vpop.xlane.xlu0 %2055
        %v2057 = vsel %vm535, %v2049, -inf
        %2058 = vmax.xlane.f32.xlu0 %v2057
        %v2059 = vpop.xlane.xlu0 %2058
        %v2060 = vsel %vm535, %v2050, -inf
        %2061 = vmax.xlane.f32.xlu0 %v2060
        %v2062 = vpop.xlane.xlu0 %2061
        %v2063 = vsub.f32 %v2047, %v2053
        %v2064 = vsub.f32 %v2048, %v2056
        %v2065 = vsub.f32 %v2049, %v2059
        %v2066 = vsub.f32 %v2050, %v2062
        %v2067 = vmul.f32 %v2063, 1.442695
        %v2068 = vpow.pop %v2067
        %v2069 = vmul.f32 %v2064, 1.442695
        %v2070 = vpow.pop %v2069
        %v2071 = vmul.f32 %v2065, 1.442695
        %v2072 = vpow.pop %v2071
        %v2073 = vmul.f32 %v2066, 1.442695
        %v2074 = vpow.pop %v2073
        %v2075 = vsel %vm535, %v2068, 0.0
        %2076 = vadd.xlane.f32.xlu0 %v2075
        %v2077 = vpop.xlane.xlu0 %2076
        %v2078 = vsel %vm535, %v2070, 0.0
        %2079 = vadd.xlane.f32.xlu0 %v2078
        %v2080 = vpop.xlane.xlu0 %2079
        %v2081 = vsel %vm535, %v2072, 0.0
        %2082 = vadd.xlane.f32.xlu0 %v2081
        %v2083 = vpop.xlane.xlu0 %2082
        %v2084 = vsel %vm535, %v2074, 0.0
        %2085 = vadd.xlane.f32.xlu0 %v2084
        %v2086 = vpop.xlane.xlu0 %2085
        %v2087 = vrcp.pop %v2077
        %v2088 = vrcp.pop %v2080
        %v2089 = vrcp.pop %v2083
        %v2090 = vrcp.pop %v2086
        %v2091 = vmul.f32 %v2068, %v2087
        %v2092 = vmul.f32 %v2070, %v2088
        %v2093 = vmul.f32 %v2072, %v2089
        %v2094 = vmul.f32 %v2074, %v2090
        %v2095 = vsel %vm2046, %v2091, 0.0
        %v2096 = vsel %vm2046, %v2092, 0.0
        %v2097 = vsel %vm2046, %v2093, 0.0
        %v2098 = vsel %vm2046, %v2094, 0.0
        %v2099 = vpack.c.bf16 %v2095, %v2095
        %v2100 = vpack.c.bf16 %v2096, %v2096
        %v2101 = vpack.c.bf16 %v2097, %v2097
        %v2102 = vpack.c.bf16 %v2098, %v2098
        %v2104 = vsel %vm535, %v2099, 0
        %vm2106 = vcmask 1043456
        %v2108 = vsel %vm2106, %v492, 0
        %2110 = vmatprep.subr.bf16.mxu0 0
        %2111 = vmatpush1.bf16.msra.mxu0 %v2108
        %2112 = vmatprep.subr.bf16.mxu0 0
        %2113 = vmatpush1.bf16.msra.mxu0 0
        %2114 = vmatprep.subr.bf16.mxu0 0
        %2115 = vmatpush1.bf16.msra.mxu0 0
        %2116 = vmatprep.subr.bf16.mxu0 0
        %2117 = vmatpush1.bf16.msra.mxu0 0
        %2118 = vmatprep.subr.bf16.mxu0 0
        %2119 = vmatpush1.bf16.msra.mxu0 0
        %2120 = vmatprep.subr.bf16.mxu0 0
        %2121 = vmatpush1.bf16.msra.mxu0 0
        %2122 = vmatprep.subr.bf16.mxu0 0
        %2123 = vmatpush1.bf16.msra.mxu0 0
        %2124 = vmatprep.subr.bf16.mxu0 0
        %2125 = vmatpush1.bf16.msra.mxu0 0
        %2126 = vmatprep.subr.bf16.mxu0 0
        %2127 = vmatpush1.bf16.msra.mxu0 0
        %2128 = vmatprep.subr.bf16.mxu0 0
        %2129 = vmatpush1.bf16.msra.mxu0 0
        %2130 = vmatprep.subr.bf16.mxu0 0
        %2131 = vmatpush1.bf16.msra.mxu0 0
        %2132 = vmatprep.subr.bf16.mxu0 0
        %2133 = vmatpush1.bf16.msra.mxu0 0
        %2134 = vmatprep.subr.bf16.mxu0 0
        %2135 = vmatpush1.bf16.msra.mxu0 0
        %2136 = vmatprep.subr.bf16.mxu0 0
        %2137 = vmatpush1.bf16.msra.mxu0 0
        %2138 = vmatprep.subr.bf16.mxu0 0
        %2139 = vmatpush1.bf16.msra.mxu0 0
        %2140 = vmatprep.subr.bf16.mxu0 0
        %2141 = vmatpush1.bf16.msra.mxu0 0
        %2142 = vmatprep.mubr.bf16.mxu0 0
        %2143 = vmatmul.mubr.bf16.gmra.mrb[0].mxu0 %v2104
        %v2144 = vpop.f32.mrb[0].mxu0
        %v2145 = vadd.f32 0.0, %v2144
        %v2146 = vpop.f32.mrb[0].mxu0
        %v2147 = vpop.f32.mrb[0].mxu0
        %v2148 = vpop.f32.mrb[0].mxu0
        %2149 = vdwg.mxu0
        %v2151 = vsel %vm535, %v2100, 0
        %v2154 = vsel %vm2106, %v493, 0
        %2156 = vmatprep.subr.bf16.mxu0 0
        %2157 = vmatpush1.bf16.msra.mxu0 %v2154
        %2158 = vmatprep.subr.bf16.mxu0 0
        %2159 = vmatpush1.bf16.msra.mxu0 0
        %2160 = vmatprep.subr.bf16.mxu0 0
        %2161 = vmatpush1.bf16.msra.mxu0 0
        %2162 = vmatprep.subr.bf16.mxu0 0
        %2163 = vmatpush1.bf16.msra.mxu0 0
        %2164 = vmatprep.subr.bf16.mxu0 0
        %2165 = vmatpush1.bf16.msra.mxu0 0
        %2166 = vmatprep.subr.bf16.mxu0 0
        %2167 = vmatpush1.bf16.msra.mxu0 0
        %2168 = vmatprep.subr.bf16.mxu0 0
        %2169 = vmatpush1.bf16.msra.mxu0 0
        %2170 = vmatprep.subr.bf16.mxu0 0
        %2171 = vmatpush1.bf16.msra.mxu0 0
        %2172 = vmatprep.subr.bf16.mxu0 0
        %2173 = vmatpush1.bf16.msra.mxu0 0
        %2174 = vmatprep.subr.bf16.mxu0 0
        %2175 = vmatpush1.bf16.msra.mxu0 0
        %2176 = vmatprep.subr.bf16.mxu0 0
        %2177 = vmatpush1.bf16.msra.mxu0 0
        %2178 = vmatprep.subr.bf16.mxu0 0
        %2179 = vmatpush1.bf16.msra.mxu0 0
        %2180 = vmatprep.subr.bf16.mxu0 0
        %2181 = vmatpush1.bf16.msra.mxu0 0
        %2182 = vmatprep.subr.bf16.mxu0 0
        %2183 = vmatpush1.bf16.msra.mxu0 0
        %2184 = vmatprep.subr.bf16.mxu0 0
        %2185 = vmatpush1.bf16.msra.mxu0 0
        %2186 = vmatprep.subr.bf16.mxu0 0
        %2187 = vmatpush1.bf16.msra.mxu0 0
        %2188 = vmatprep.mubr.bf16.mxu0 0
        %2189 = vmatmul.mubr.bf16.gmra.mrb[0].mxu0 %v2151
        %v2190 = vpop.f32.mrb[0].mxu0
        %v2191 = vadd.f32 0.0, %v2190
        %v2192 = vpop.f32.mrb[0].mxu0
        %v2193 = vpop.f32.mrb[0].mxu0
        %v2194 = vpop.f32.mrb[0].mxu0
        %2195 = vdwg.mxu0
        %v2197 = vsel %vm535, %v2101, 0
        %v2200 = vsel %vm2106, %v494, 0
        %2202 = vmatprep.subr.bf16.mxu0 0
        %2203 = vmatpush1.bf16.msra.mxu0 %v2200
        %2204 = vmatprep.subr.bf16.mxu0 0
        %2205 = vmatpush1.bf16.msra.mxu0 0
        %2206 = vmatprep.subr.bf16.mxu0 0
        %2207 = vmatpush1.bf16.msra.mxu0 0
        %2208 = vmatprep.subr.bf16.mxu0 0
        %2209 = vmatpush1.bf16.msra.mxu0 0
        %2210 = vmatprep.subr.bf16.mxu0 0
        %2211 = vmatpush1.bf16.msra.mxu0 0
        %2212 = vmatprep.subr.bf16.mxu0 0
        %2213 = vmatpush1.bf16.msra.mxu0 0
        %2214 = vmatprep.subr.bf16.mxu0 0
        %2215 = vmatpush1.bf16.msra.mxu0 0
        %2216 = vmatprep.subr.bf16.mxu0 0
        %2217 = vmatpush1.bf16.msra.mxu0 0
        %2218 = vmatprep.subr.bf16.mxu0 0
        %2219 = vmatpush1.bf16.msra.mxu0 0
        %2220 = vmatprep.subr.bf16.mxu0 0
        %2221 = vmatpush1.bf16.msra.mxu0 0
        %2222 = vmatprep.subr.bf16.mxu0 0
        %2223 = vmatpush1.bf16.msra.mxu0 0
        %2224 = vmatprep.subr.bf16.mxu0 0
        %2225 = vmatpush1.bf16.msra.mxu0 0
        %2226 = vmatprep.subr.bf16.mxu0 0
        %2227 = vmatpush1.bf16.msra.mxu0 0
        %2228 = vmatprep.subr.bf16.mxu0 0
        %2229 = vmatpush1.bf16.msra.mxu0 0
        %2230 = vmatprep.subr.bf16.mxu0 0
        %2231 = vmatpush1.bf16.msra.mxu0 0
        %2232 = vmatprep.subr.bf16.mxu0 0
        %2233 = vmatpush1.bf16.msra.mxu0 0
        %2234 = vmatprep.mubr.bf16.mxu0 0
        %2235 = vmatmul.mubr.bf16.gmra.mrb[0].mxu0 %v2197
        %v2236 = vpop.f32.mrb[0].mxu0
        %v2237 = vadd.f32 0.0, %v2236
        %v2238 = vpop.f32.mrb[0].mxu0
        %v2239 = vpop.f32.mrb[0].mxu0
        %v2240 = vpop.f32.mrb[0].mxu0
        %2241 = vdwg.mxu0
        %v2243 = vsel %vm535, %v2102, 0
        %v2246 = vsel %vm2106, %v495, 0
        %2248 = vmatprep.subr.bf16.mxu0 0
        %2249 = vmatpush1.bf16.msra.mxu0 %v2246
        %2250 = vmatprep.subr.bf16.mxu0 0
        %2251 = vmatpush1.bf16.msra.mxu0 0
        %2252 = vmatprep.subr.bf16.mxu0 0
        %2253 = vmatpush1.bf16.msra.mxu0 0
        %2254 = vmatprep.subr.bf16.mxu0 0
        %2255 = vmatpush1.bf16.msra.mxu0 0
        %2256 = vmatprep.subr.bf16.mxu0 0
        %2257 = vmatpush1.bf16.msra.mxu0 0
        %2258 = vmatprep.subr.bf16.mxu0 0
        %2259 = vmatpush1.bf16.msra.mxu0 0
        %2260 = vmatprep.subr.bf16.mxu0 0
        %2261 = vmatpush1.bf16.msra.mxu0 0
        %2262 = vmatprep.subr.bf16.mxu0 0
        %2263 = vmatpush1.bf16.msra.mxu0 0
        %2264 = vmatprep.subr.bf16.mxu0 0
        %2265 = vmatpush1.bf16.msra.mxu0 0
        %2266 = vmatprep.subr.bf16.mxu0 0
        %2267 = vmatpush1.bf16.msra.mxu0 0
        %2268 = vmatprep.subr.bf16.mxu0 0
        %2269 = vmatpush1.bf16.msra.mxu0 0
        %2270 = vmatprep.subr.bf16.mxu0 0
        %2271 = vmatpush1.bf16.msra.mxu0 0
        %2272 = vmatprep.subr.bf16.mxu0 0
        %2273 = vmatpush1.bf16.msra.mxu0 0
        %2274 = vmatprep.subr.bf16.mxu0 0
        %2275 = vmatpush1.bf16.msra.mxu0 0
        %2276 = vmatprep.subr.bf16.mxu0 0
        %2277 = vmatpush1.bf16.msra.mxu0 0
        %2278 = vmatprep.subr.bf16.mxu0 0
        %2279 = vmatpush1.bf16.msra.mxu0 0
        %2280 = vmatprep.mubr.bf16.mxu0 0
        %2281 = vmatmul.mubr.bf16.gmra.mrb[0].mxu0 %v2243
        %v2282 = vpop.f32.mrb[0].mxu0
        %v2283 = vadd.f32 0.0, %v2282
        %v2284 = vpop.f32.mrb[0].mxu0
        %v2285 = vpop.f32.mrb[0].mxu0
        %v2286 = vpop.f32.mrb[0].mxu0
        %2287 = vdwg.mxu0
        %2289 = vrot.lane.b32.xlu0 %v2191, 8
        %v2290 = vpop.permute.xlu0 %2289
        %2293 = vrot.lane.b32.xlu0 %v2237, 16
        %v2294 = vpop.permute.xlu0 %2293
        %2297 = vrot.lane.b32.xlu0 %v2283, 24
        %v2298 = vpop.permute.xlu0 %2297
        %v2300 = vsel %vm535, %v2145, %v2290
        %v2301 = vsel %vm1037, %v2300, %v2294
        %vm2302 = vcmask 195584
        %v2303 = vsel %vm2302, %v2301, %v2298
        %vm2304 = vcmask 261120
        %2305 = vst.msk [vmem:[%s481] sm:$0xff] %vm2304, %v2303
        %s2306 = sand.u32 %s229, 1
        %s2307 = scalar_lea.sflag [#allocation4], %s2306
        %s2308 = sand.u32 %s229, 1
        %s2309 = smul.addr %s2308, 8
        %s2310 = scalar_lea.vmem [#allocation14], %s2309
        // Predicated region
        $region77: #{tpu_custom_call.1} parent=47 // pred_check
          %p2311 = pneg %p239
        $region78: #{tpu_custom_call.1} parent=47 // pred_check_branch
          %2313 = sbr.rel (%p2311) target = $region80
        $region79: #{tpu_custom_call.1} parent=47 // pred_region
          %s2315 = ssub.s32 128, 128
          %2316 = vsyncadd %s2307, %s2315
          %s2317 = sadd.s32 %s36, %s35
          %s2318 = smul.addr %s2317, 128
          %s2319 = scalar_lea.hbm %s7, %s2318
          %s2321 = sshll.u32 %s2310, 4
          %s2322 = int_to_ptr.vmem [resolvable:$true] %s2321
          %2324 = dma.vmem_to_hbm [thread:$0]  %s2322, 128, %s2319, %s2307
        $region80: #{tpu_custom_call.1} parent=47 // pred_fallthru
          _
      $region48: #{tpu_custom_call.1} parent=5 // pred_fallthru
        _
      %p2325 = scmp.le.s32.totalorder 2, %s26
      // Predicated region
      $region81: #{tpu_custom_call.1} parent=5 // pred_check
        %p2326 = pneg %p2325
      $region82: #{tpu_custom_call.1} parent=5 // pred_check_branch
        %2328 = sbr.rel (%p2326) target = $region84
      $region83: #{tpu_custom_call.1} parent=5 // pred_region
        %s2329 = ssub.s32 %s26, 2
        // Predicated region
        $region85: #{tpu_custom_call.1} parent=83 // pred_check
          %p2330 = pneg %p245
        $region86: #{tpu_custom_call.1} parent=83 // pred_check_branch
          %2332 = sbr.rel (%p2330) target = $region88
        $region87: #{tpu_custom_call.1} parent=83 // pred_region
          %s2333 = sand.u32 %s230, 1
          %s2334 = scalar_lea.sflag [#allocation4], %s2333
          %s2335 = sand.u32 %s230, 1
          %s2336 = smul.addr %s2335, 8
          %s2337 = scalar_lea.vmem [#allocation14], %s2336
          %2338 = dma.done %s2334, 128
        $region88: #{tpu_custom_call.1} parent=83 // pred_fallthru
          _
      $region84: #{tpu_custom_call.1} parent=5 // pred_fallthru
        _
    $region6: #{tpu_custom_call.1} parent=1 // loop_footer
      %s30 = sadd.s32 1, %s26
    $region7: #{tpu_custom_call.1} parent=1 // loop_footer_branch
      %25 = sbr.rel target = $region3
    $region8: #{tpu_custom_call.1} parent=1 // loop_exit
      _
    %2339 = vsyncpa [#allocation3], 1
    %s2340 = scalar_lea.sflag [#allocation3], 1
    %2341 = vsyncpa %s2340, 1
    %2342 = vsyncpa [#allocation6], 1
    %s2343 = scalar_lea.sflag [#allocation6], 1
    %2344 = vsyncpa %s2343, 1
    %2345 = vsyncpa [#allocation9], 1
    %2346 = vsyncpa [#allocation12], 1
    %s2347 = scalar_lea.sflag [#allocation12], 1
    %2348 = vsyncpa %s2347, 1
    %2349 = vsyncpa [#allocation4], 1
    %s2350 = scalar_lea.sflag [#allocation4], 1
    %2351 = vsyncpa %s2350, 1

</llo_original>
